<compile_context>
chip_gen: v7x
topology: tpu7x:2x2x1
jax: 0.10.0
libtpu: 0.0.40
codegen_flags: <defaults>
</compile_context>

<pallas_src>
import functools

import jax
import jax.numpy as jnp
from jax.experimental import pallas as pl
from jax.experimental.pallas import tpu as pltpu

_HALO = 2  # max receptive-field halo of any branch (5-tap conv / two 3-taps)


# ------------------------------ Pallas kernel ------------------------------

def _inception_a_kernel(xc_ref, xl_ref, xr_ref,
                        w1_ref, b1_ref,
                        w2b_ref, b2b_ref,
                        w3b_ref, b3b_ref,
                        w3c_ref, b3c_ref,
                        w4_ref, b4_ref,
                        o_ref, *, L, c1, c2r, c2, c3r, c3, c4):
    i = pl.program_id(1)                 # L-tile index
    n_tiles = pl.num_programs(1)
    cin = xc_ref.shape[1]
    tl = xc_ref.shape[2]

    xc = xc_ref[0]                       # (cin, tl)  channels on sublanes
    xl = xl_ref[0]
    xr = xr_ref[0]

    # Halo columns from the neighbouring tiles; zero outside the true sequence.
    left = jnp.where(i == 0, 0.0, xl[:, tl - _HALO:tl])          # (cin, 2)
    right = jnp.where(i == n_tiles - 1, 0.0, xr[:, 0:_HALO])     # (cin, 2)
    x_ext = jnp.concatenate([left, xc, right], axis=1)           # (cin, tl+4)

    # Global positions of the extended columns and their validity.
    g_ext = i * tl + jax.lax.broadcasted_iota(jnp.int32, (1, tl + 2 * _HALO), 1) - _HALO
    valid_ext = jnp.logical_and(g_ext >= 0, g_ext < L)           # (1, tl+4)
    vmask = valid_ext.astype(jnp.float32)

    # ---- fused 1x1 convs on x: branch1 | branch2-reduce | branch3-reduce ----
    h = jnp.dot(w1_ref[...], x_ext, preferred_element_type=jnp.float32)
    h = jnp.clip(h + b1_ref[...], 0.0, 6.0)                      # (c1+c2r+c3r, tl+4)
    out1 = h[0:c1, _HALO:_HALO + tl]                             # (c1, tl)
    h2a = h[c1:c1 + c2r, :] * vmask                              # zero-pad semantics
    h3a = h[c1 + c2r:c1 + c2r + c3r, :] * vmask

    # ---- branch 2: 5-tap conv (c2r -> c2), padding 2 -------------------------
    acc2 = jnp.zeros((c2, tl), jnp.float32)
    for t in range(5):
        acc2 = acc2 + jnp.dot(w2b_ref[t], h2a[:, t:t + tl],
                              preferred_element_type=jnp.float32)
    out2 = jnp.clip(acc2 + b2b_ref[...], 0.0, 6.0)

    # ---- branch 3: 3-tap (c3r -> c3) then 3-tap (c3 -> c3), padding 1 --------
    acc3 = jnp.zeros((c3, tl + 2), jnp.float32)
    for t in range(3):
        acc3 = acc3 + jnp.dot(w3b_ref[t], h3a[:, t:t + tl + 2],
                              preferred_element_type=jnp.float32)
    h3b = jnp.clip(acc3 + b3b_ref[...], 0.0, 6.0)                # offsets [-1, tl]
    g_mid = i * tl + jax.lax.broadcasted_iota(jnp.int32, (1, tl + 2), 1) - 1
    h3b = h3b * jnp.logical_and(g_mid >= 0, g_mid < L).astype(jnp.float32)

    acc3c = jnp.zeros((c3, tl), jnp.float32)
    for t in range(3):
        acc3c = acc3c + jnp.dot(w3c_ref[t], h3b[:, t:t + tl],
                                preferred_element_type=jnp.float32)
    out3 = jnp.clip(acc3c + b3c_ref[...], 0.0, 6.0)

    # ---- branch 4: maxpool(3, stride 1, -inf pad) fused with 1x1 conv --------
    big_neg = jnp.float32(-3.0e38)
    xm = jnp.where(valid_ext, x_ext, big_neg)
    pooled = jnp.maximum(jnp.maximum(xm[:, 1:1 + tl], xm[:, 2:2 + tl]),
                         xm[:, 3:3 + tl])                        # (cin, tl)
    g_c = i * tl + jax.lax.broadcasted_iota(jnp.int32, (1, tl), 1)
    pooled = jnp.where(g_c < L, pooled, 0.0)                     # kill pad-tail cols
    out4 = jnp.clip(jnp.dot(w4_ref[...], pooled, preferred_element_type=jnp.float32)
                    + b4_ref[...], 0.0, 6.0)

    # Channel-sliced write of the fused NCL output (no XLA concat / transpose).
    o_ref[0] = jnp.concatenate([out1, out2, out3, out4], axis=0)


# ------------------------------ Python wrapper ------------------------------

def inception_v3_module_a(x_ncl, params, tile_l=512):
    """x_ncl: (N, C_in, L) -> (N, C1+C2+C3+C4, L), matching torch.cat(dim=1)."""
    N, cin, L = x_ncl.shape
    c1, c2r, c2, c3r, c3, c4 = params["channels"]
    ctot = c1 + c2 + c3 + c4

    if L <= tile_l:
        tl, l_tiles, l_pad = L, 1, L
        x_in = x_ncl
    else:
        assert tile_l % 128 == 0, "multi-tile path needs lane-aligned tiles"
        tl = tile_l
        l_tiles = pl.cdiv(L, tl)
        l_pad = l_tiles * tl
        x_in = jnp.pad(x_ncl, ((0, 0), (0, 0), (0, l_pad - L)))

    kernel = functools.partial(_inception_a_kernel, L=L,
                               c1=c1, c2r=c2r, c2=c2, c3r=c3r, c3=c3, c4=c4)

    weights = [params["w_1x1"], params["b_1x1"],
               params["w_b2b"], params["b_b2b"],
               params["w_b3b"], params["b_b3b"],
               params["w_b3c"], params["b_b3c"],
               params["w_b4"], params["b_b4"]]

    def full_spec(a):
        nd = a.ndim
        return pl.BlockSpec(a.shape, lambda n, i, nd=nd: (0,) * nd)

    in_specs = [
        # center tile + clamped left / right neighbours (halo source)
        pl.BlockSpec((1, cin, tl), lambda n, i: (n, 0, i)),
        pl.BlockSpec((1, cin, tl), lambda n, i: (n, 0, jnp.maximum(i - 1, 0))),
        pl.BlockSpec((1, cin, tl), lambda n, i: (n, 0, jnp.minimum(i + 1, l_tiles - 1))),
    ] + [full_spec(w) for w in weights]

    flops = 2 * N * L * (cin * (c1 + c2r + c3r + c4)
                         + 5 * c2r * c2 + 3 * c3r * c3 + 3 * c3 * c3)
    bytes_accessed = 4 * N * l_pad * (3 * cin + ctot) + 4 * sum(int(w.size) for w in weights)

    out = pl.pallas_call(
        kernel,
        out_shape=jax.ShapeDtypeStruct((N, ctot, l_pad), jnp.float32),
        grid=(N, l_tiles),
        in_specs=in_specs,
        out_specs=pl.BlockSpec((1, ctot, tl), lambda n, i: (n, 0, i)),
        compiler_params=pltpu.CompilerParams(
            dimension_semantics=("parallel", "parallel"),
            vmem_limit_bytes=32 * 1024 * 1024),
        cost_estimate=pl.CostEstimate(flops=flops, transcendentals=0,
                                      bytes_accessed=bytes_accessed),
    )(x_in, x_in, x_in, *weights)

    if l_pad != L:
        out = out[:, :, :L]
    return out


# ------------------------- parameters (BN folded) ---------------------------

def make_convbnrelu_params(key, cin, cout, k, eps=1e-5):
    """Deterministic synthetic Conv1d + BatchNorm1d params, BN scale folded
    into the conv weights. Returns w: (k, Cout, Cin), bias: (Cout,)."""
    kw, kb, kg, kbt, km, kv = jax.random.split(key, 6)
    w = 0.1 * jax.random.normal(kw, (cout, cin, k), jnp.float32)   # PyTorch layout
    b = 0.1 * jax.random.normal(kb, (cout,), jnp.float32)
    gamma = 1.0 + 0.1 * jax.random.normal(kg, (cout,), jnp.float32)
    beta = 0.1 * jax.random.normal(kbt, (cout,), jnp.float32)
    mean = 0.1 * jax.random.normal(km, (cout,), jnp.float32)
    var = jnp.abs(jax.random.normal(kv, (cout,), jnp.float32)) + 0.5
    scale = gamma / jnp.sqrt(var + eps)
    bias = beta + (b - mean) * scale
    w_eff = jnp.transpose(w, (2, 0, 1)) * scale[None, :, None]     # (k, Cout, Cin)
    return {"w": w_eff, "bias": bias}


def init_inception_a_params(key, in_ch, c1, c2r, c2, c3r, c3, c4):
    ks = jax.random.split(key, 7)
    b1 = make_convbnrelu_params(ks[0], in_ch, c1, 1)
    b2a = make_convbnrelu_params(ks[1], in_ch, c2r, 1)
    b2b = make_convbnrelu_params(ks[2], c2r, c2, 5)
    b3a = make_convbnrelu_params(ks[3], in_ch, c3r, 1)
    b3b = make_convbnrelu_params(ks[4], c3r, c3, 3)
    b3c = make_convbnrelu_params(ks[5], c3, c3, 3)
    b4 = make_convbnrelu_params(ks[6], in_ch, c4, 1)
    return {
        # branch1 / branch2-reduce / branch3-reduce 1x1 convs fused along Cout
        "w_1x1": jnp.concatenate([b1["w"][0], b2a["w"][0], b3a["w"][0]], axis=0),
        "b_1x1": jnp.concatenate([b1["bias"], b2a["bias"], b3a["bias"]])[:, None],
        "w_b2b": b2b["w"], "b_b2b": b2b["bias"][:, None],
        "w_b3b": b3b["w"], "b_b3b": b3b["bias"][:, None],
        "w_b3c": b3c["w"], "b_b3c": b3c["bias"][:, None],
        "w_b4": b4["w"][0], "b_b4": b4["bias"][:, None],
        "channels": (c1, c2r, c2, c3r, c3, c4),
        "raw": {"b1": b1, "b2a": b2a, "b2b": b2b,
                "b3a": b3a, "b3b": b3b, "b3c": b3c, "b4": b4},
    }


# -------------------------- pure-JAX reference ------------------------------

def _ref_forward(x_ncl, raw):
    def conv_bn_relu6(x, w, bias):                 # w: (k, Cout, Cin) scale-folded
        k = w.shape[0]
        pad = (k - 1) // 2
        L = x.shape[2]
        xp = jnp.pad(x, ((0, 0), (0, 0), (pad, pad)))
        y = sum(jnp.einsum("oc,ncl->nol", w[t], xp[:, :, t:t + L]) for t in range(k))
        return jnp.clip(y + bias.reshape(1, -1, 1), 0.0, 6.0)

    def maxpool3(x):
        L = x.shape[2]
        xp = jnp.pad(x, ((0, 0), (0, 0), (1, 1)), constant_values=-jnp.inf)
        return jnp.maximum(jnp.maximum(xp[:, :, 0:L], xp[:, :, 1:L + 1]), xp[:, :, 2:L + 2])

    o1 = conv_bn_relu6(x_ncl, raw["b1"]["w"], raw["b1"]["bias"])
    t = conv_bn_relu6(x_ncl, raw["b2a"]["w"], raw["b2a"]["bias"])
    o2 = conv_bn_relu6(t, raw["b2b"]["w"], raw["b2b"]["bias"])
    t = conv_bn_relu6(x_ncl, raw["b3a"]["w"], raw["b3a"]["bias"])
    t = conv_bn_relu6(t, raw["b3b"]["w"], raw["b3b"]["bias"])
    o3 = conv_bn_relu6(t, raw["b3c"]["w"], raw["b3c"]["bias"])
    o4 = conv_bn_relu6(maxpool3(x_ncl), raw["b4"]["w"], raw["b4"]["bias"])
    return jnp.concatenate([o1, o2, o3, o4], axis=1)


# --------------------------------- main ------------------------------------

if __name__ == "__main__":
    N, C_IN, L = 2, 8, 16
    C1, C2R, C2, C3R, C3, C4 = 8, 8, 8, 8, 8, 8

    key = jax.random.PRNGKey(0)
    k_x, k_p = jax.random.split(key)
    x = jax.random.normal(k_x, (N, C_IN, L), jnp.float32)
    params = init_inception_a_params(k_p, C_IN, C1, C2R, C2, C3R, C3, C4)

    out = inception_v3_module_a(x, params)
    out = jax.block_until_ready(out)
    assert out.shape == (N, C1 + C2 + C3 + C4, L), out.shape

    ref = _ref_forward(x, params["raw"])
    err = float(jnp.max(jnp.abs(out - ref)))
    assert err < 1e-2, f"mismatch vs reference: {err}"
    assert bool(jnp.all(out >= 0.0)) and bool(jnp.all(out <= 6.0))  # ReLU6 range
    print("KERNEL_OK")
</pallas_src>

<mosaic_0001>
module attributes {stable_mosaic.version = 11 : i64} {
  func.func @_inception_a_kernel(%arg0: i32, %arg1: i32, %arg2: memref<1x8x16xf32, #tpu.memory_space<vmem>>, %arg3: memref<1x8x16xf32, #tpu.memory_space<vmem>>, %arg4: memref<1x8x16xf32, #tpu.memory_space<vmem>>, %arg5: memref<24x8xf32, #tpu.memory_space<vmem>>, %arg6: memref<24x1xf32, #tpu.memory_space<vmem>>, %arg7: memref<5x8x8xf32, #tpu.memory_space<vmem>>, %arg8: memref<8x1xf32, #tpu.memory_space<vmem>>, %arg9: memref<3x8x8xf32, #tpu.memory_space<vmem>>, %arg10: memref<8x1xf32, #tpu.memory_space<vmem>>, %arg11: memref<3x8x8xf32, #tpu.memory_space<vmem>>, %arg12: memref<8x1xf32, #tpu.memory_space<vmem>>, %arg13: memref<8x8xf32, #tpu.memory_space<vmem>>, %arg14: memref<8x1xf32, #tpu.memory_space<vmem>>, %arg15: memref<1x32x16xf32, #tpu.memory_space<vmem>>) attributes {dimension_semantics = [#tpu.dimension_semantics<parallel>, #tpu.dimension_semantics<parallel>], iteration_bounds = array<i64: 2, 1>, scalar_prefetch = 0 : i64, scratch_operands = 0 : i64, tpu.core_type = #tpu.core_type<tc>, window_params = [{transform_indices = @transform_0, window_bounds = array<i64: 1, 8, 16>}, {transform_indices = @transform_1, window_bounds = array<i64: 1, 8, 16>}, {transform_indices = @transform_2, window_bounds = array<i64: 1, 8, 16>}, {pipeline_mode = #tpu.pipeline_mode<synchronous>, transform_indices = @transform_3, window_bounds = array<i64: 24, 8>}, {pipeline_mode = #tpu.pipeline_mode<synchronous>, transform_indices = @transform_4, window_bounds = array<i64: 24, 1>}, {pipeline_mode = #tpu.pipeline_mode<synchronous>, transform_indices = @transform_5, window_bounds = array<i64: 5, 8, 8>}, {pipeline_mode = #tpu.pipeline_mode<synchronous>, transform_indices = @transform_6, window_bounds = array<i64: 8, 1>}, {pipeline_mode = #tpu.pipeline_mode<synchronous>, transform_indices = @transform_7, window_bounds = array<i64: 3, 8, 8>}, {pipeline_mode = #tpu.pipeline_mode<synchronous>, transform_indices = @transform_8, window_bounds = array<i64: 8, 1>}, {pipeline_mode = #tpu.pipeline_mode<synchronous>, transform_indices = @transform_9, window_bounds = array<i64: 3, 8, 8>}, {pipeline_mode = #tpu.pipeline_mode<synchronous>, transform_indices = @transform_10, window_bounds = array<i64: 8, 1>}, {pipeline_mode = #tpu.pipeline_mode<synchronous>, transform_indices = @transform_11, window_bounds = array<i64: 8, 8>}, {pipeline_mode = #tpu.pipeline_mode<synchronous>, transform_indices = @transform_12, window_bounds = array<i64: 8, 1>}, {transform_indices = @transform_13, window_bounds = array<i64: 1, 32, 16>}]} {
    %c0 = arith.constant 0 : index
    %c0_0 = arith.constant 0 : index
    %c0_1 = arith.constant 0 : index
    %0 = vector.load %arg2[%c0, %c0_0, %c0_1] : memref<1x8x16xf32, #tpu.memory_space<vmem>>, vector<1x8x16xf32>
    %1 = vector.shape_cast %0 : vector<1x8x16xf32> to vector<8x16xf32>
    %c0_2 = arith.constant 0 : index
    %c0_3 = arith.constant 0 : index
    %c0_4 = arith.constant 0 : index
    %2 = vector.load %arg3[%c0_2, %c0_3, %c0_4] : memref<1x8x16xf32, #tpu.memory_space<vmem>>, vector<1x8x16xf32>
    %3 = vector.shape_cast %2 : vector<1x8x16xf32> to vector<8x16xf32>
    %c0_5 = arith.constant 0 : index
    %c0_6 = arith.constant 0 : index
    %c0_7 = arith.constant 0 : index
    %4 = vector.load %arg4[%c0_5, %c0_6, %c0_7] : memref<1x8x16xf32, #tpu.memory_space<vmem>>, vector<1x8x16xf32>
    %5 = vector.shape_cast %4 : vector<1x8x16xf32> to vector<8x16xf32>
    %c0_i32 = arith.constant 0 : i32
    %6 = arith.cmpi eq, %arg1, %c0_i32 : i32
    %7 = vector.extract_strided_slice %3 {offsets = [0, 14], sizes = [8, 2], strides = [1, 1]} : vector<8x16xf32> to vector<8x2xf32>
    %cst = arith.constant 0.000000e+00 : f32
    %8 = vector.broadcast %cst : f32 to vector<8x2xf32>
    %9 = arith.select %6, %8, %7 : vector<8x2xf32>
    %c0_i32_8 = arith.constant 0 : i32
    %10 = arith.cmpi eq, %arg1, %c0_i32_8 : i32
    %11 = vector.extract_strided_slice %5 {offsets = [0, 0], sizes = [8, 2], strides = [1, 1]} : vector<8x16xf32> to vector<8x2xf32>
    %cst_9 = arith.constant 0.000000e+00 : f32
    %12 = vector.broadcast %cst_9 : f32 to vector<8x2xf32>
    %13 = arith.select %10, %12, %11 : vector<8x2xf32>
    %14 = tpu.concatenate %9, %1, %13 in 1 : vector<8x2xf32>, vector<8x16xf32>, vector<8x2xf32> -> vector<8x20xf32>
    %c16_i32 = arith.constant 16 : i32
    %15 = arith.muli %arg1, %c16_i32 : i32
    %16 = tpu.iota {dimensions = array<i32: 1>} : vector<1x20xi32>
    %17 = vector.broadcast %15 : i32 to vector<1x20xi32>
    %18 = arith.addi %17, %16 : vector<1x20xi32>
    %c2_i32 = arith.constant 2 : i32
    %19 = vector.broadcast %c2_i32 : i32 to vector<1x20xi32>
    %20 = arith.subi %18, %19 : vector<1x20xi32>
    %c0_i32_10 = arith.constant 0 : i32
    %21 = vector.broadcast %c0_i32_10 : i32 to vector<1x20xi32>
    %22 = arith.cmpi sge, %20, %21 : vector<1x20xi32>
    %c16_i32_11 = arith.constant 16 : i32
    %23 = vector.broadcast %c16_i32_11 : i32 to vector<1x20xi32>
    %24 = arith.cmpi slt, %20, %23 : vector<1x20xi32>
    %25 = arith.andi %22, %24 : vector<1x20xi1>
    %26 = arith.extui %25 : vector<1x20xi1> to vector<1x20xi32>
    %27 = arith.sitofp %26 : vector<1x20xi32> to vector<1x20xf32>
    %c0_12 = arith.constant 0 : index
    %c0_13 = arith.constant 0 : index
    %28 = vector.load %arg5[%c0_12, %c0_13] : memref<24x8xf32, #tpu.memory_space<vmem>>, vector<24x8xf32>
    %cst_14 = arith.constant dense<0.000000e+00> : vector<24x20xf32>
    %29 = tpu.matmul %28, %14, %cst_14 {dimension_numbers = #tpu.dot_dimension_numbers<[1], [0], [0], [1], [0, 0, 1, 1], [], []>} : vector<24x8xf32>, vector<8x20xf32>, vector<24x20xf32> -> vector<24x20xf32>
    %c0_15 = arith.constant 0 : index
    %c0_16 = arith.constant 0 : index
    %30 = vector.load %arg6[%c0_15, %c0_16] : memref<24x1xf32, #tpu.memory_space<vmem>>, vector<24x1xf32>
    %31 = vector.broadcast %30 : vector<24x1xf32> to vector<24x20xf32>
    %32 = arith.addf %29, %31 : vector<24x20xf32>
    %cst_17 = arith.constant 0.000000e+00 : f32
    %cst_18 = arith.constant 6.000000e+00 : f32
    %33 = vector.broadcast %cst_17 : f32 to vector<24x20xf32>
    %34 = arith.maximumf %33, %32 : vector<24x20xf32>
    %35 = vector.broadcast %cst_18 : f32 to vector<24x20xf32>
    %36 = arith.minimumf %35, %34 : vector<24x20xf32>
    %37 = vector.extract_strided_slice %36 {offsets = [0, 2], sizes = [8, 16], strides = [1, 1]} : vector<24x20xf32> to vector<8x16xf32>
    %38 = vector.extract_strided_slice %36 {offsets = [8, 0], sizes = [8, 20], strides = [1, 1]} : vector<24x20xf32> to vector<8x20xf32>
    %39 = vector.broadcast %27 : vector<1x20xf32> to vector<8x20xf32>
    %40 = arith.mulf %38, %39 : vector<8x20xf32>
    %41 = vector.extract_strided_slice %36 {offsets = [16, 0], sizes = [8, 20], strides = [1, 1]} : vector<24x20xf32> to vector<8x20xf32>
    %42 = vector.broadcast %27 : vector<1x20xf32> to vector<8x20xf32>
    %43 = arith.mulf %41, %42 : vector<8x20xf32>
    %cst_19 = arith.constant 0.000000e+00 : f32
    %44 = vector.broadcast %cst_19 : f32 to vector<8x16xf32>
    %c0_20 = arith.constant 0 : index
    %c0_21 = arith.constant 0 : index
    %c0_22 = arith.constant 0 : index
    %45 = vector.load %arg7[%c0_20, %c0_21, %c0_22] : memref<5x8x8xf32, #tpu.memory_space<vmem>>, vector<1x8x8xf32>
    %46 = vector.shape_cast %45 : vector<1x8x8xf32> to vector<8x8xf32>
    %47 = vector.extract_strided_slice %40 {offsets = [0, 0], sizes = [8, 16], strides = [1, 1]} : vector<8x20xf32> to vector<8x16xf32>
    %cst_23 = arith.constant dense<0.000000e+00> : vector<8x16xf32>
    %48 = tpu.matmul %46, %47, %cst_23 {dimension_numbers = #tpu.dot_dimension_numbers<[1], [0], [0], [1], [0, 0, 1, 1], [], []>} : vector<8x8xf32>, vector<8x16xf32>, vector<8x16xf32> -> vector<8x16xf32>
    %49 = arith.addf %44, %48 : vector<8x16xf32>
    %c1 = arith.constant 1 : index
    %c0_24 = arith.constant 0 : index
    %c0_25 = arith.constant 0 : index
    %50 = vector.load %arg7[%c1, %c0_24, %c0_25] : memref<5x8x8xf32, #tpu.memory_space<vmem>>, vector<1x8x8xf32>
    %51 = vector.shape_cast %50 : vector<1x8x8xf32> to vector<8x8xf32>
    %52 = vector.extract_strided_slice %40 {offsets = [0, 1], sizes = [8, 16], strides = [1, 1]} : vector<8x20xf32> to vector<8x16xf32>
    %cst_26 = arith.constant dense<0.000000e+00> : vector<8x16xf32>
    %53 = tpu.matmul %51, %52, %cst_26 {dimension_numbers = #tpu.dot_dimension_numbers<[1], [0], [0], [1], [0, 0, 1, 1], [], []>} : vector<8x8xf32>, vector<8x16xf32>, vector<8x16xf32> -> vector<8x16xf32>
    %54 = arith.addf %49, %53 : vector<8x16xf32>
    %c2 = arith.constant 2 : index
    %c0_27 = arith.constant 0 : index
    %c0_28 = arith.constant 0 : index
    %55 = vector.load %arg7[%c2, %c0_27, %c0_28] : memref<5x8x8xf32, #tpu.memory_space<vmem>>, vector<1x8x8xf32>
    %56 = vector.shape_cast %55 : vector<1x8x8xf32> to vector<8x8xf32>
    %57 = vector.extract_strided_slice %40 {offsets = [0, 2], sizes = [8, 16], strides = [1, 1]} : vector<8x20xf32> to vector<8x16xf32>
    %cst_29 = arith.constant dense<0.000000e+00> : vector<8x16xf32>
    %58 = tpu.matmul %56, %57, %cst_29 {dimension_numbers = #tpu.dot_dimension_numbers<[1], [0], [0], [1], [0, 0, 1, 1], [], []>} : vector<8x8xf32>, vector<8x16xf32>, vector<8x16xf32> -> vector<8x16xf32>
    %59 = arith.addf %54, %58 : vector<8x16xf32>
    %c3 = arith.constant 3 : index
    %c0_30 = arith.constant 0 : index
    %c0_31 = arith.constant 0 : index
    %60 = vector.load %arg7[%c3, %c0_30, %c0_31] : memref<5x8x8xf32, #tpu.memory_space<vmem>>, vector<1x8x8xf32>
    %61 = vector.shape_cast %60 : vector<1x8x8xf32> to vector<8x8xf32>
    %62 = vector.extract_strided_slice %40 {offsets = [0, 3], sizes = [8, 16], strides = [1, 1]} : vector<8x20xf32> to vector<8x16xf32>
    %cst_32 = arith.constant dense<0.000000e+00> : vector<8x16xf32>
    %63 = tpu.matmul %61, %62, %cst_32 {dimension_numbers = #tpu.dot_dimension_numbers<[1], [0], [0], [1], [0, 0, 1, 1], [], []>} : vector<8x8xf32>, vector<8x16xf32>, vector<8x16xf32> -> vector<8x16xf32>
    %64 = arith.addf %59, %63 : vector<8x16xf32>
    %c4 = arith.constant 4 : index
    %c0_33 = arith.constant 0 : index
    %c0_34 = arith.constant 0 : index
    %65 = vector.load %arg7[%c4, %c0_33, %c0_34] : memref<5x8x8xf32, #tpu.memory_space<vmem>>, vector<1x8x8xf32>
    %66 = vector.shape_cast %65 : vector<1x8x8xf32> to vector<8x8xf32>
    %67 = vector.extract_strided_slice %40 {offsets = [0, 4], sizes = [8, 16], strides = [1, 1]} : vector<8x20xf32> to vector<8x16xf32>
    %cst_35 = arith.constant dense<0.000000e+00> : vector<8x16xf32>
    %68 = tpu.matmul %66, %67, %cst_35 {dimension_numbers = #tpu.dot_dimension_numbers<[1], [0], [0], [1], [0, 0, 1, 1], [], []>} : vector<8x8xf32>, vector<8x16xf32>, vector<8x16xf32> -> vector<8x16xf32>
    %69 = arith.addf %64, %68 : vector<8x16xf32>
    %c0_36 = arith.constant 0 : index
    %c0_37 = arith.constant 0 : index
    %70 = vector.load %arg8[%c0_36, %c0_37] : memref<8x1xf32, #tpu.memory_space<vmem>>, vector<8x1xf32>
    %71 = vector.broadcast %70 : vector<8x1xf32> to vector<8x16xf32>
    %72 = arith.addf %69, %71 : vector<8x16xf32>
    %cst_38 = arith.constant 0.000000e+00 : f32
    %cst_39 = arith.constant 6.000000e+00 : f32
    %73 = vector.broadcast %cst_38 : f32 to vector<8x16xf32>
    %74 = arith.maximumf %73, %72 : vector<8x16xf32>
    %75 = vector.broadcast %cst_39 : f32 to vector<8x16xf32>
    %76 = arith.minimumf %75, %74 : vector<8x16xf32>
    %cst_40 = arith.constant 0.000000e+00 : f32
    %77 = vector.broadcast %cst_40 : f32 to vector<8x18xf32>
    %c0_41 = arith.constant 0 : index
    %c0_42 = arith.constant 0 : index
    %c0_43 = arith.constant 0 : index
    %78 = vector.load %arg9[%c0_41, %c0_42, %c0_43] : memref<3x8x8xf32, #tpu.memory_space<vmem>>, vector<1x8x8xf32>
    %79 = vector.shape_cast %78 : vector<1x8x8xf32> to vector<8x8xf32>
    %80 = vector.extract_strided_slice %43 {offsets = [0, 0], sizes = [8, 18], strides = [1, 1]} : vector<8x20xf32> to vector<8x18xf32>
    %cst_44 = arith.constant dense<0.000000e+00> : vector<8x18xf32>
    %81 = tpu.matmul %79, %80, %cst_44 {dimension_numbers = #tpu.dot_dimension_numbers<[1], [0], [0], [1], [0, 0, 1, 1], [], []>} : vector<8x8xf32>, vector<8x18xf32>, vector<8x18xf32> -> vector<8x18xf32>
    %82 = arith.addf %77, %81 : vector<8x18xf32>
    %c1_45 = arith.constant 1 : index
    %c0_46 = arith.constant 0 : index
    %c0_47 = arith.constant 0 : index
    %83 = vector.load %arg9[%c1_45, %c0_46, %c0_47] : memref<3x8x8xf32, #tpu.memory_space<vmem>>, vector<1x8x8xf32>
    %84 = vector.shape_cast %83 : vector<1x8x8xf32> to vector<8x8xf32>
    %85 = vector.extract_strided_slice %43 {offsets = [0, 1], sizes = [8, 18], strides = [1, 1]} : vector<8x20xf32> to vector<8x18xf32>
    %cst_48 = arith.constant dense<0.000000e+00> : vector<8x18xf32>
    %86 = tpu.matmul %84, %85, %cst_48 {dimension_numbers = #tpu.dot_dimension_numbers<[1], [0], [0], [1], [0, 0, 1, 1], [], []>} : vector<8x8xf32>, vector<8x18xf32>, vector<8x18xf32> -> vector<8x18xf32>
    %87 = arith.addf %82, %86 : vector<8x18xf32>
    %c2_49 = arith.constant 2 : index
    %c0_50 = arith.constant 0 : index
    %c0_51 = arith.constant 0 : index
    %88 = vector.load %arg9[%c2_49, %c0_50, %c0_51] : memref<3x8x8xf32, #tpu.memory_space<vmem>>, vector<1x8x8xf32>
    %89 = vector.shape_cast %88 : vector<1x8x8xf32> to vector<8x8xf32>
    %90 = vector.extract_strided_slice %43 {offsets = [0, 2], sizes = [8, 18], strides = [1, 1]} : vector<8x20xf32> to vector<8x18xf32>
    %cst_52 = arith.constant dense<0.000000e+00> : vector<8x18xf32>
    %91 = tpu.matmul %89, %90, %cst_52 {dimension_numbers = #tpu.dot_dimension_numbers<[1], [0], [0], [1], [0, 0, 1, 1], [], []>} : vector<8x8xf32>, vector<8x18xf32>, vector<8x18xf32> -> vector<8x18xf32>
    %92 = arith.addf %87, %91 : vector<8x18xf32>
    %c0_53 = arith.constant 0 : index
    %c0_54 = arith.constant 0 : index
    %93 = vector.load %arg10[%c0_53, %c0_54] : memref<8x1xf32, #tpu.memory_space<vmem>>, vector<8x1xf32>
    %94 = vector.broadcast %93 : vector<8x1xf32> to vector<8x18xf32>
    %95 = arith.addf %92, %94 : vector<8x18xf32>
    %cst_55 = arith.constant 0.000000e+00 : f32
    %cst_56 = arith.constant 6.000000e+00 : f32
    %96 = vector.broadcast %cst_55 : f32 to vector<8x18xf32>
    %97 = arith.maximumf %96, %95 : vector<8x18xf32>
    %98 = vector.broadcast %cst_56 : f32 to vector<8x18xf32>
    %99 = arith.minimumf %98, %97 : vector<8x18xf32>
    %c16_i32_57 = arith.constant 16 : i32
    %100 = arith.muli %arg1, %c16_i32_57 : i32
    %101 = tpu.iota {dimensions = array<i32: 1>} : vector<1x18xi32>
    %102 = vector.broadcast %100 : i32 to vector<1x18xi32>
    %103 = arith.addi %102, %101 : vector<1x18xi32>
    %c1_i32 = arith.constant 1 : i32
    %104 = vector.broadcast %c1_i32 : i32 to vector<1x18xi32>
    %105 = arith.subi %103, %104 : vector<1x18xi32>
    %c0_i32_58 = arith.constant 0 : i32
    %106 = vector.broadcast %c0_i32_58 : i32 to vector<1x18xi32>
    %107 = arith.cmpi sge, %105, %106 : vector<1x18xi32>
    %c16_i32_59 = arith.constant 16 : i32
    %108 = vector.broadcast %c16_i32_59 : i32 to vector<1x18xi32>
    %109 = arith.cmpi slt, %105, %108 : vector<1x18xi32>
    %110 = arith.andi %107, %109 : vector<1x18xi1>
    %111 = arith.extui %110 : vector<1x18xi1> to vector<1x18xi32>
    %112 = arith.sitofp %111 : vector<1x18xi32> to vector<1x18xf32>
    %113 = vector.broadcast %112 : vector<1x18xf32> to vector<8x18xf32>
    %114 = arith.mulf %99, %113 : vector<8x18xf32>
    %cst_60 = arith.constant 0.000000e+00 : f32
    %115 = vector.broadcast %cst_60 : f32 to vector<8x16xf32>
    %c0_61 = arith.constant 0 : index
    %c0_62 = arith.constant 0 : index
    %c0_63 = arith.constant 0 : index
    %116 = vector.load %arg11[%c0_61, %c0_62, %c0_63] : memref<3x8x8xf32, #tpu.memory_space<vmem>>, vector<1x8x8xf32>
    %117 = vector.shape_cast %116 : vector<1x8x8xf32> to vector<8x8xf32>
    %118 = vector.extract_strided_slice %114 {offsets = [0, 0], sizes = [8, 16], strides = [1, 1]} : vector<8x18xf32> to vector<8x16xf32>
    %cst_64 = arith.constant dense<0.000000e+00> : vector<8x16xf32>
    %119 = tpu.matmul %117, %118, %cst_64 {dimension_numbers = #tpu.dot_dimension_numbers<[1], [0], [0], [1], [0, 0, 1, 1], [], []>} : vector<8x8xf32>, vector<8x16xf32>, vector<8x16xf32> -> vector<8x16xf32>
    %120 = arith.addf %115, %119 : vector<8x16xf32>
    %c1_65 = arith.constant 1 : index
    %c0_66 = arith.constant 0 : index
    %c0_67 = arith.constant 0 : index
    %121 = vector.load %arg11[%c1_65, %c0_66, %c0_67] : memref<3x8x8xf32, #tpu.memory_space<vmem>>, vector<1x8x8xf32>
    %122 = vector.shape_cast %121 : vector<1x8x8xf32> to vector<8x8xf32>
    %123 = vector.extract_strided_slice %114 {offsets = [0, 1], sizes = [8, 16], strides = [1, 1]} : vector<8x18xf32> to vector<8x16xf32>
    %cst_68 = arith.constant dense<0.000000e+00> : vector<8x16xf32>
    %124 = tpu.matmul %122, %123, %cst_68 {dimension_numbers = #tpu.dot_dimension_numbers<[1], [0], [0], [1], [0, 0, 1, 1], [], []>} : vector<8x8xf32>, vector<8x16xf32>, vector<8x16xf32> -> vector<8x16xf32>
    %125 = arith.addf %120, %124 : vector<8x16xf32>
    %c2_69 = arith.constant 2 : index
    %c0_70 = arith.constant 0 : index
    %c0_71 = arith.constant 0 : index
    %126 = vector.load %arg11[%c2_69, %c0_70, %c0_71] : memref<3x8x8xf32, #tpu.memory_space<vmem>>, vector<1x8x8xf32>
    %127 = vector.shape_cast %126 : vector<1x8x8xf32> to vector<8x8xf32>
    %128 = vector.extract_strided_slice %114 {offsets = [0, 2], sizes = [8, 16], strides = [1, 1]} : vector<8x18xf32> to vector<8x16xf32>
    %cst_72 = arith.constant dense<0.000000e+00> : vector<8x16xf32>
    %129 = tpu.matmul %127, %128, %cst_72 {dimension_numbers = #tpu.dot_dimension_numbers<[1], [0], [0], [1], [0, 0, 1, 1], [], []>} : vector<8x8xf32>, vector<8x16xf32>, vector<8x16xf32> -> vector<8x16xf32>
    %130 = arith.addf %125, %129 : vector<8x16xf32>
    %c0_73 = arith.constant 0 : index
    %c0_74 = arith.constant 0 : index
    %131 = vector.load %arg12[%c0_73, %c0_74] : memref<8x1xf32, #tpu.memory_space<vmem>>, vector<8x1xf32>
    %132 = vector.broadcast %131 : vector<8x1xf32> to vector<8x16xf32>
    %133 = arith.addf %130, %132 : vector<8x16xf32>
    %cst_75 = arith.constant 0.000000e+00 : f32
    %cst_76 = arith.constant 6.000000e+00 : f32
    %134 = vector.broadcast %cst_75 : f32 to vector<8x16xf32>
    %135 = arith.maximumf %134, %133 : vector<8x16xf32>
    %136 = vector.broadcast %cst_76 : f32 to vector<8x16xf32>
    %137 = arith.minimumf %136, %135 : vector<8x16xf32>
    %cst_77 = arith.constant -3.000000e+38 : f32
    %138 = vector.shape_cast %25 : vector<1x20xi1> to vector<1x20xi1>
    %139 = vector.broadcast %138 : vector<1x20xi1> to vector<8x20xi1>
    %140 = vector.broadcast %cst_77 : f32 to vector<8x20xf32>
    %141 = arith.select %139, %14, %140 : vector<8x20xi1>, vector<8x20xf32>
    %142 = vector.extract_strided_slice %141 {offsets = [0, 1], sizes = [8, 16], strides = [1, 1]} : vector<8x20xf32> to vector<8x16xf32>
    %143 = vector.extract_strided_slice %141 {offsets = [0, 2], sizes = [8, 16], strides = [1, 1]} : vector<8x20xf32> to vector<8x16xf32>
    %144 = arith.maximumf %142, %143 : vector<8x16xf32>
    %145 = vector.extract_strided_slice %141 {offsets = [0, 3], sizes = [8, 16], strides = [1, 1]} : vector<8x20xf32> to vector<8x16xf32>
    %146 = arith.maximumf %144, %145 : vector<8x16xf32>
    %c16_i32_78 = arith.constant 16 : i32
    %147 = arith.muli %arg1, %c16_i32_78 : i32
    %148 = tpu.iota {dimensions = array<i32: 1>} : vector<1x16xi32>
    %149 = vector.broadcast %147 : i32 to vector<1x16xi32>
    %150 = arith.addi %149, %148 : vector<1x16xi32>
    %c16_i32_79 = arith.constant 16 : i32
    %151 = vector.broadcast %c16_i32_79 : i32 to vector<1x16xi32>
    %152 = arith.cmpi slt, %150, %151 : vector<1x16xi32>
    %cst_80 = arith.constant 0.000000e+00 : f32
    %153 = vector.shape_cast %152 : vector<1x16xi1> to vector<1x16xi1>
    %154 = vector.broadcast %153 : vector<1x16xi1> to vector<8x16xi1>
    %155 = vector.broadcast %cst_80 : f32 to vector<8x16xf32>
    %156 = arith.select %154, %146, %155 : vector<8x16xi1>, vector<8x16xf32>
    %c0_81 = arith.constant 0 : index
    %c0_82 = arith.constant 0 : index
    %157 = vector.load %arg13[%c0_81, %c0_82] : memref<8x8xf32, #tpu.memory_space<vmem>>, vector<8x8xf32>
    %cst_83 = arith.constant dense<0.000000e+00> : vector<8x16xf32>
    %158 = tpu.matmul %157, %156, %cst_83 {dimension_numbers = #tpu.dot_dimension_numbers<[1], [0], [0], [1], [0, 0, 1, 1], [], []>} : vector<8x8xf32>, vector<8x16xf32>, vector<8x16xf32> -> vector<8x16xf32>
    %c0_84 = arith.constant 0 : index
    %c0_85 = arith.constant 0 : index
    %159 = vector.load %arg14[%c0_84, %c0_85] : memref<8x1xf32, #tpu.memory_space<vmem>>, vector<8x1xf32>
    %160 = vector.broadcast %159 : vector<8x1xf32> to vector<8x16xf32>
    %161 = arith.addf %158, %160 : vector<8x16xf32>
    %cst_86 = arith.constant 0.000000e+00 : f32
    %cst_87 = arith.constant 6.000000e+00 : f32
    %162 = vector.broadcast %cst_86 : f32 to vector<8x16xf32>
    %163 = arith.maximumf %162, %161 : vector<8x16xf32>
    %164 = vector.broadcast %cst_87 : f32 to vector<8x16xf32>
    %165 = arith.minimumf %164, %163 : vector<8x16xf32>
    %166 = tpu.concatenate %37, %76, %137, %165 in 0 : vector<8x16xf32>, vector<8x16xf32>, vector<8x16xf32>, vector<8x16xf32> -> vector<32x16xf32>
    %c0_88 = arith.constant 0 : index
    %c0_89 = arith.constant 0 : index
    %c0_90 = arith.constant 0 : index
    %167 = vector.load %arg15[%c0_88, %c0_89, %c0_90] : memref<1x32x16xf32, #tpu.memory_space<vmem>>, vector<1x32x16xf32>
    %168 = vector.shape_cast %167 : vector<1x32x16xf32> to vector<32x16xf32>
    %169 = vector.shape_cast %166 : vector<32x16xf32> to vector<1x32x16xf32>
    tpu.vector_store %arg15[%c0_88, %c0_89, %c0_90], %169 {strides = array<i32>} : memref<1x32x16xf32, #tpu.memory_space<vmem>>, vector<1x32x16xf32>,
    return
  }
  func.func @transform_0(%arg0: i32, %arg1: i32) -> (i32, i32, i32) {
    %c0_i32 = arith.constant 0 : i32
    %c0_i32_0 = arith.constant 0 : i32
    return %arg0, %c0_i32, %arg1 : i32, i32, i32
  }
  func.func @transform_1(%arg0: i32, %arg1: i32) -> (i32, i32, i32) {
    %c1_i32 = arith.constant 1 : i32
    %0 = arith.subi %arg1, %c1_i32 : i32
    %c0_i32 = arith.constant 0 : i32
    %1 = arith.maxsi %0, %c0_i32 : i32
    %c0_i32_0 = arith.constant 0 : i32
    %c0_i32_1 = arith.constant 0 : i32
    return %arg0, %c0_i32_0, %1 : i32, i32, i32
  }
  func.func @transform_2(%arg0: i32, %arg1: i32) -> (i32, i32, i32) {
    %c1_i32 = arith.constant 1 : i32
    %0 = arith.addi %arg1, %c1_i32 : i32
    %c0_i32 = arith.constant 0 : i32
    %1 = arith.minsi %0, %c0_i32 : i32
    %c0_i32_0 = arith.constant 0 : i32
    %c0_i32_1 = arith.constant 0 : i32
    return %arg0, %c0_i32_0, %1 : i32, i32, i32
  }
  func.func @transform_3(%arg0: i32, %arg1: i32) -> (i32, i32) {
    %c0_i32 = arith.constant 0 : i32
    %c0_i32_0 = arith.constant 0 : i32
    %c0_i32_1 = arith.constant 0 : i32
    return %c0_i32, %c0_i32_0 : i32, i32
  }
  func.func @transform_4(%arg0: i32, %arg1: i32) -> (i32, i32) {
    %c0_i32 = arith.constant 0 : i32
    %c0_i32_0 = arith.constant 0 : i32
    %c0_i32_1 = arith.constant 0 : i32
    return %c0_i32, %c0_i32_0 : i32, i32
  }
  func.func @transform_5(%arg0: i32, %arg1: i32) -> (i32, i32, i32) {
    %c0_i32 = arith.constant 0 : i32
    %c0_i32_0 = arith.constant 0 : i32
    %c0_i32_1 = arith.constant 0 : i32
    %c0_i32_2 = arith.constant 0 : i32
    return %c0_i32, %c0_i32_0, %c0_i32_1 : i32, i32, i32
  }
  func.func @transform_6(%arg0: i32, %arg1: i32) -> (i32, i32) {
    %c0_i32 = arith.constant 0 : i32
    %c0_i32_0 = arith.constant 0 : i32
    %c0_i32_1 = arith.constant 0 : i32
    return %c0_i32, %c0_i32_0 : i32, i32
  }
  func.func @transform_7(%arg0: i32, %arg1: i32) -> (i32, i32, i32) {
    %c0_i32 = arith.constant 0 : i32
    %c0_i32_0 = arith.constant 0 : i32
    %c0_i32_1 = arith.constant 0 : i32
    %c0_i32_2 = arith.constant 0 : i32
    return %c0_i32, %c0_i32_0, %c0_i32_1 : i32, i32, i32
  }
  func.func @transform_8(%arg0: i32, %arg1: i32) -> (i32, i32) {
    %c0_i32 = arith.constant 0 : i32
    %c0_i32_0 = arith.constant 0 : i32
    %c0_i32_1 = arith.constant 0 : i32
    return %c0_i32, %c0_i32_0 : i32, i32
  }
  func.func @transform_9(%arg0: i32, %arg1: i32) -> (i32, i32, i32) {
    %c0_i32 = arith.constant 0 : i32
    %c0_i32_0 = arith.constant 0 : i32
    %c0_i32_1 = arith.constant 0 : i32
    %c0_i32_2 = arith.constant 0 : i32
    return %c0_i32, %c0_i32_0, %c0_i32_1 : i32, i32, i32
  }
  func.func @transform_10(%arg0: i32, %arg1: i32) -> (i32, i32) {
    %c0_i32 = arith.constant 0 : i32
    %c0_i32_0 = arith.constant 0 : i32
    %c0_i32_1 = arith.constant 0 : i32
    return %c0_i32, %c0_i32_0 : i32, i32
  }
  func.func @transform_11(%arg0: i32, %arg1: i32) -> (i32, i32) {
    %c0_i32 = arith.constant 0 : i32
    %c0_i32_0 = arith.constant 0 : i32
    %c0_i32_1 = arith.constant 0 : i32
    return %c0_i32, %c0_i32_0 : i32, i32
  }
  func.func @transform_12(%arg0: i32, %arg1: i32) -> (i32, i32) {
    %c0_i32 = arith.constant 0 : i32
    %c0_i32_0 = arith.constant 0 : i32
    %c0_i32_1 = arith.constant 0 : i32
    return %c0_i32, %c0_i32_0 : i32, i32
  }
  func.func @transform_13(%arg0: i32, %arg1: i32) -> (i32, i32, i32) {
    %c0_i32 = arith.constant 0 : i32
    %c0_i32_0 = arith.constant 0 : i32
    return %arg0, %c0_i32, %arg1 : i32, i32, i32
  }
}

</mosaic_0001>

<llo_original>
// kernel: tpu_custom_call.1
$region0: #{tpu_custom_call.1}
  #allocation0 [shape = 'u32[]', space=smem, size = 0x4, offset = 0x4, fixed_abs, tag = 'smem constant byte address 0x4 - core index']
  #allocation1 [shape = 'u32[144,128]{1,0:T(1,128)}', space=vmem, size = 0x12000, scoped, tag = 'internal scratch']
  %s0 = inlined_call_operand.hbm [shape: f32[2,8,16], index: 0, kind: input, shape index: {}]
  %s1 = inlined_call_operand.hbm [shape: f32[2,8,16], index: 1, kind: input, shape index: {}]
  %s2 = inlined_call_operand.hbm [shape: f32[2,8,16], index: 2, kind: input, shape index: {}]
  %s3 = inlined_call_operand.vmem [shape: f32[24,8], index: 3, kind: input, shape index: {}]
  %s4 = inlined_call_operand.vmem [shape: f32[24,1], index: 4, kind: input, shape index: {}]
  %s5 = inlined_call_operand.vmem [shape: f32[5,8,8], index: 5, kind: input, shape index: {}]
  %s6 = inlined_call_operand.vmem [shape: f32[8,1], index: 6, kind: input, shape index: {}]
  %s7 = inlined_call_operand.vmem [shape: f32[3,8,8], index: 7, kind: input, shape index: {}]
  %s8 = inlined_call_operand.vmem [shape: f32[8,1], index: 8, kind: input, shape index: {}]
  %s9 = inlined_call_operand.vmem [shape: f32[3,8,8], index: 9, kind: input, shape index: {}]
  %s10 = inlined_call_operand.vmem [shape: f32[8,1], index: 10, kind: input, shape index: {}]
  %s11 = inlined_call_operand.vmem [shape: f32[8,8], index: 11, kind: input, shape index: {}]
  %s12 = inlined_call_operand.vmem [shape: f32[8,1], index: 12, kind: input, shape index: {}]
  %s13 = inlined_call_operand.vmem [shape: f32[2,32,16], index: 13, kind: output, shape index: {}]
  %s14 = sld [smem:[#allocation0]]
  $region97: #{tpu_custom_call.1} parent=0
    _
  %s16 = ssub.s32 1, %s14
  %s17 = scalar_select 0, %s16, %s14
  $region1: #{tpu_custom_call.1} parent=0
    #allocation2 [shape = 'u8[8192]{0}', space=vmem, size = 0x2000, scoped, tag = 'input window, operand 0']
    #allocation3 [shape = 's32[2]{0}', space=sflag, size = 0x8, scoped, tag = 'scoped memory for tpu_custom_call.1']
    #allocation4 [shape = 'u8[8192]{0}', space=vmem, size = 0x2000, scoped, tag = 'input window, operand 1']
    #allocation5 [shape = 's32[2]{0}', space=sflag, size = 0x8, scoped, tag = 'scoped memory for tpu_custom_call.1']
    #allocation6 [shape = 'u8[8192]{0}', space=vmem, size = 0x2000, scoped, tag = 'input window, operand 2']
    %18 = vsyncpa [#allocation3], 0
    %s19 = scalar_lea.sflag [#allocation3], 1
    %20 = vsyncpa %s19, 0
    %21 = vsyncpa [#allocation5], 0
    %s22 = scalar_lea.sflag [#allocation5], 1
    %23 = vsyncpa %s22, 0
    loop: start=0, step=1, limit=4
    $region2: #{tpu_custom_call.1} parent=1 // loop_pre_header
      _
    $region3: #{tpu_custom_call.1} parent=1 // loop_header
      %s25 = sphi 0, %s29
      %p26 = scmp.ge.s32.totalorder %s25, 4
      %s32 = sphi 0, %s44
      %s33 = sphi 0, %s40
      %s34 = sphi 0, %s32
      %s35 = sphi 0, %s33
      %s36 = sphi 0, %s34
      %s37 = sphi 0, %s35
      %s49 = sphi 0, %s51
      %s52 = sphi 0, %s49
      %s53 = sphi 0, %s52
      %s69 = sphi 0, %s53
      %s83 = sphi 0, %s85
      %s86 = sphi 0, %s83
      %s87 = sphi 0, %s86
      %s103 = sphi 0, %s87
      %s117 = sphi 0, %s119
      %s120 = sphi 0, %s117
      %s121 = sphi 0, %s120
      %s137 = sphi 0, %s121
      %s141 = sphi 0, %s141
      %s143 = sphi 0, %s141
      %s144 = sphi 0, %s143
      %s158 = sphi 0, %s144
      %s162 = sphi 0, %s162
      %s164 = sphi 0, %s162
      %s165 = sphi 0, %s164
      %s179 = sphi 0, %s165
      %s183 = sphi 0, %s183
      %s185 = sphi 0, %s183
      %s186 = sphi 0, %s185
      %s200 = sphi 0, %s186
      %s204 = sphi 0, %s204
      %s206 = sphi 0, %s204
      %s207 = sphi 0, %s206
      %s221 = sphi 0, %s207
      %s225 = sphi 0, %s225
      %s227 = sphi 0, %s225
      %s228 = sphi 0, %s227
      %s242 = sphi 0, %s228
      %s246 = sphi 0, %s246
      %s248 = sphi 0, %s246
      %s249 = sphi 0, %s248
      %s263 = sphi 0, %s249
      %s267 = sphi 0, %s267
      %s269 = sphi 0, %s267
      %s270 = sphi 0, %s269
      %s284 = sphi 0, %s270
      %s288 = sphi 0, %s288
      %s290 = sphi 0, %s288
      %s291 = sphi 0, %s290
      %s305 = sphi 0, %s291
      %s309 = sphi 0, %s309
      %s311 = sphi 0, %s309
      %s312 = sphi 0, %s311
      %s326 = sphi 0, %s312
      %s330 = sphi 0, %s330
      %s332 = sphi 0, %s330
      %s333 = sphi 0, %s332
      %s347 = sphi 0, %s333
      %s355 = sphi 0, %s357
      %s358 = sphi 0, %s355
      %s359 = sphi 0, %s358
      %s375 = sphi 0, %s359
    $region4: #{tpu_custom_call.1} parent=1 // loop_header_branch
      %28 = sbr.rel (%p26) target = $region8
    $region5: #{tpu_custom_call.1} parent=1 // loop_body
      %s30 = ssub.s32 %s25, 1
      %s31 = ssub.s32 %s25, 2
      %s38 = sadd.s32 1, %s33
      %p39 = scmp.ge.s32.totalorder %s38, 1
      %s40 = scalar_select %p39, 0, %s38
      %s41 = sadd.s32 1, %s32
      %s42 = scalar_select %p39, %s41, %s32
      %p43 = scmp.ge.s32.totalorder %s42, 2
      %s44 = scalar_select %p43, 0, %s42
      %s45 = ssub.s32 %s32, %s44
      %s46 = ssub.s32 %s33, %s40
      %s47 = sor.u32 %s45, %s46
      %p48 = scmp.eq.s32.totalorder %s47, 0
      %s50 = sadd.s32 %s49, 1
      %s51 = scalar_select %p48, %s49, %s50
      %p54 = pneg %p48
      %p55 = scmp.eq.s32.totalorder %s25, 1
      %p56 = por %p54, %p55
      %p57 = scmp.ne.s32.totalorder %s49, %s52
      %p58 = scmp.eq.s32.totalorder %s25, 0
      %p59 = por %p57, %p58
      %p60 = scmp.ne.s32.totalorder %s49, %s52
      %p61 = scmp.eq.s32.totalorder %s30, 1
      %p62 = por %p60, %p61
      %p63 = scmp.ne.s32.totalorder %s52, %s53
      %p64 = scmp.eq.s32.totalorder %s30, 0
      %p65 = por %p63, %p64
      %p66 = scmp.ne.s32.totalorder %s52, %s53
      %p67 = scmp.eq.s32.totalorder %s31, 1
      %p68 = por %p66, %p67
      %p70 = scmp.ne.s32.totalorder %s53, %s69
      %p71 = scmp.eq.s32.totalorder %s31, 0
      %p72 = por %p70, %p71
      %s73 = ssub.s32 %s33, 1
      %p74 = scmp.gt.s32.totalorder %s73, 0
      %s75 = scalar_select %p74, %s73, 0
      %s76 = ssub.s32 %s40, 1
      %p77 = scmp.gt.s32.totalorder %s76, 0
      %s78 = scalar_select %p77, %s76, 0
      %s79 = ssub.s32 %s32, %s44
      %s80 = ssub.s32 %s75, %s78
      %s81 = sor.u32 %s79, %s80
      %p82 = scmp.eq.s32.totalorder %s81, 0
      %s84 = sadd.s32 %s83, 1
      %s85 = scalar_select %p82, %s83, %s84
      %p88 = pneg %p82
      %p89 = scmp.eq.s32.totalorder %s25, 1
      %p90 = por %p88, %p89
      %p91 = scmp.ne.s32.totalorder %s83, %s86
      %p92 = scmp.eq.s32.totalorder %s25, 0
      %p93 = por %p91, %p92
      %p94 = scmp.ne.s32.totalorder %s83, %s86
      %p95 = scmp.eq.s32.totalorder %s30, 1
      %p96 = por %p94, %p95
      %p97 = scmp.ne.s32.totalorder %s86, %s87
      %p98 = scmp.eq.s32.totalorder %s30, 0
      %p99 = por %p97, %p98
      %p100 = scmp.ne.s32.totalorder %s86, %s87
      %p101 = scmp.eq.s32.totalorder %s31, 1
      %p102 = por %p100, %p101
      %p104 = scmp.ne.s32.totalorder %s87, %s103
      %p105 = scmp.eq.s32.totalorder %s31, 0
      %p106 = por %p104, %p105
      %s107 = sadd.s32 %s33, 1
      %p108 = scmp.lt.s32.totalorder %s107, 0
      %s109 = scalar_select %p108, %s107, 0
      %s110 = sadd.s32 %s40, 1
      %p111 = scmp.lt.s32.totalorder %s110, 0
      %s112 = scalar_select %p111, %s110, 0
      %s113 = ssub.s32 %s32, %s44
      %s114 = ssub.s32 %s109, %s112
      %s115 = sor.u32 %s113, %s114
      %p116 = scmp.eq.s32.totalorder %s115, 0
      %s118 = sadd.s32 %s117, 1
      %s119 = scalar_select %p116, %s117, %s118
      %p122 = pneg %p116
      %p123 = scmp.eq.s32.totalorder %s25, 1
      %p124 = por %p122, %p123
      %p125 = scmp.ne.s32.totalorder %s117, %s120
      %p126 = scmp.eq.s32.totalorder %s25, 0
      %p127 = por %p125, %p126
      %p128 = scmp.ne.s32.totalorder %s117, %s120
      %p129 = scmp.eq.s32.totalorder %s30, 1
      %p130 = por %p128, %p129
      %p131 = scmp.ne.s32.totalorder %s120, %s121
      %p132 = scmp.eq.s32.totalorder %s30, 0
      %p133 = por %p131, %p132
      %p134 = scmp.ne.s32.totalorder %s120, %s121
      %p135 = scmp.eq.s32.totalorder %s31, 1
      %p136 = por %p134, %p135
      %p138 = scmp.ne.s32.totalorder %s121, %s137
      %p139 = scmp.eq.s32.totalorder %s31, 0
      %p140 = por %p138, %p139
      %s142 = sadd.s32 %s141, 1
      %p145 = scmp.eq.s32.totalorder %s25, 1
      %p146 = scmp.ne.s32.totalorder %s141, %s143
      %p147 = scmp.eq.s32.totalorder %s25, 0
      %p148 = por %p146, %p147
      %p149 = scmp.ne.s32.totalorder %s141, %s143
      %p150 = scmp.eq.s32.totalorder %s30, 1
      %p151 = por %p149, %p150
      %p152 = scmp.ne.s32.totalorder %s143, %s144
      %p153 = scmp.eq.s32.totalorder %s30, 0
      %p154 = por %p152, %p153
      %p155 = scmp.ne.s32.totalorder %s143, %s144
      %p156 = scmp.eq.s32.totalorder %s31, 1
      %p157 = por %p155, %p156
      %p159 = scmp.ne.s32.totalorder %s144, %s158
      %p160 = scmp.eq.s32.totalorder %s31, 0
      %p161 = por %p159, %p160
      %s163 = sadd.s32 %s162, 1
      %p166 = scmp.eq.s32.totalorder %s25, 1
      %p167 = scmp.ne.s32.totalorder %s162, %s164
      %p168 = scmp.eq.s32.totalorder %s25, 0
      %p169 = por %p167, %p168
      %p170 = scmp.ne.s32.totalorder %s162, %s164
      %p171 = scmp.eq.s32.totalorder %s30, 1
      %p172 = por %p170, %p171
      %p173 = scmp.ne.s32.totalorder %s164, %s165
      %p174 = scmp.eq.s32.totalorder %s30, 0
      %p175 = por %p173, %p174
      %p176 = scmp.ne.s32.totalorder %s164, %s165
      %p177 = scmp.eq.s32.totalorder %s31, 1
      %p178 = por %p176, %p177
      %p180 = scmp.ne.s32.totalorder %s165, %s179
      %p181 = scmp.eq.s32.totalorder %s31, 0
      %p182 = por %p180, %p181
      %s184 = sadd.s32 %s183, 1
      %p187 = scmp.eq.s32.totalorder %s25, 1
      %p188 = scmp.ne.s32.totalorder %s183, %s185
      %p189 = scmp.eq.s32.totalorder %s25, 0
      %p190 = por %p188, %p189
      %p191 = scmp.ne.s32.totalorder %s183, %s185
      %p192 = scmp.eq.s32.totalorder %s30, 1
      %p193 = por %p191, %p192
      %p194 = scmp.ne.s32.totalorder %s185, %s186
      %p195 = scmp.eq.s32.totalorder %s30, 0
      %p196 = por %p194, %p195
      %p197 = scmp.ne.s32.totalorder %s185, %s186
      %p198 = scmp.eq.s32.totalorder %s31, 1
      %p199 = por %p197, %p198
      %p201 = scmp.ne.s32.totalorder %s186, %s200
      %p202 = scmp.eq.s32.totalorder %s31, 0
      %p203 = por %p201, %p202
      %s205 = sadd.s32 %s204, 1
      %p208 = scmp.eq.s32.totalorder %s25, 1
      %p209 = scmp.ne.s32.totalorder %s204, %s206
      %p210 = scmp.eq.s32.totalorder %s25, 0
      %p211 = por %p209, %p210
      %p212 = scmp.ne.s32.totalorder %s204, %s206
      %p213 = scmp.eq.s32.totalorder %s30, 1
      %p214 = por %p212, %p213
      %p215 = scmp.ne.s32.totalorder %s206, %s207
      %p216 = scmp.eq.s32.totalorder %s30, 0
      %p217 = por %p215, %p216
      %p218 = scmp.ne.s32.totalorder %s206, %s207
      %p219 = scmp.eq.s32.totalorder %s31, 1
      %p220 = por %p218, %p219
      %p222 = scmp.ne.s32.totalorder %s207, %s221
      %p223 = scmp.eq.s32.totalorder %s31, 0
      %p224 = por %p222, %p223
      %s226 = sadd.s32 %s225, 1
      %p229 = scmp.eq.s32.totalorder %s25, 1
      %p230 = scmp.ne.s32.totalorder %s225, %s227
      %p231 = scmp.eq.s32.totalorder %s25, 0
      %p232 = por %p230, %p231
      %p233 = scmp.ne.s32.totalorder %s225, %s227
      %p234 = scmp.eq.s32.totalorder %s30, 1
      %p235 = por %p233, %p234
      %p236 = scmp.ne.s32.totalorder %s227, %s228
      %p237 = scmp.eq.s32.totalorder %s30, 0
      %p238 = por %p236, %p237
      %p239 = scmp.ne.s32.totalorder %s227, %s228
      %p240 = scmp.eq.s32.totalorder %s31, 1
      %p241 = por %p239, %p240
      %p243 = scmp.ne.s32.totalorder %s228, %s242
      %p244 = scmp.eq.s32.totalorder %s31, 0
      %p245 = por %p243, %p244
      %s247 = sadd.s32 %s246, 1
      %p250 = scmp.eq.s32.totalorder %s25, 1
      %p251 = scmp.ne.s32.totalorder %s246, %s248
      %p252 = scmp.eq.s32.totalorder %s25, 0
      %p253 = por %p251, %p252
      %p254 = scmp.ne.s32.totalorder %s246, %s248
      %p255 = scmp.eq.s32.totalorder %s30, 1
      %p256 = por %p254, %p255
      %p257 = scmp.ne.s32.totalorder %s248, %s249
      %p258 = scmp.eq.s32.totalorder %s30, 0
      %p259 = por %p257, %p258
      %p260 = scmp.ne.s32.totalorder %s248, %s249
      %p261 = scmp.eq.s32.totalorder %s31, 1
      %p262 = por %p260, %p261
      %p264 = scmp.ne.s32.totalorder %s249, %s263
      %p265 = scmp.eq.s32.totalorder %s31, 0
      %p266 = por %p264, %p265
      %s268 = sadd.s32 %s267, 1
      %p271 = scmp.eq.s32.totalorder %s25, 1
      %p272 = scmp.ne.s32.totalorder %s267, %s269
      %p273 = scmp.eq.s32.totalorder %s25, 0
      %p274 = por %p272, %p273
      %p275 = scmp.ne.s32.totalorder %s267, %s269
      %p276 = scmp.eq.s32.totalorder %s30, 1
      %p277 = por %p275, %p276
      %p278 = scmp.ne.s32.totalorder %s269, %s270
      %p279 = scmp.eq.s32.totalorder %s30, 0
      %p280 = por %p278, %p279
      %p281 = scmp.ne.s32.totalorder %s269, %s270
      %p282 = scmp.eq.s32.totalorder %s31, 1
      %p283 = por %p281, %p282
      %p285 = scmp.ne.s32.totalorder %s270, %s284
      %p286 = scmp.eq.s32.totalorder %s31, 0
      %p287 = por %p285, %p286
      %s289 = sadd.s32 %s288, 1
      %p292 = scmp.eq.s32.totalorder %s25, 1
      %p293 = scmp.ne.s32.totalorder %s288, %s290
      %p294 = scmp.eq.s32.totalorder %s25, 0
      %p295 = por %p293, %p294
      %p296 = scmp.ne.s32.totalorder %s288, %s290
      %p297 = scmp.eq.s32.totalorder %s30, 1
      %p298 = por %p296, %p297
      %p299 = scmp.ne.s32.totalorder %s290, %s291
      %p300 = scmp.eq.s32.totalorder %s30, 0
      %p301 = por %p299, %p300
      %p302 = scmp.ne.s32.totalorder %s290, %s291
      %p303 = scmp.eq.s32.totalorder %s31, 1
      %p304 = por %p302, %p303
      %p306 = scmp.ne.s32.totalorder %s291, %s305
      %p307 = scmp.eq.s32.totalorder %s31, 0
      %p308 = por %p306, %p307
      %s310 = sadd.s32 %s309, 1
      %p313 = scmp.eq.s32.totalorder %s25, 1
      %p314 = scmp.ne.s32.totalorder %s309, %s311
      %p315 = scmp.eq.s32.totalorder %s25, 0
      %p316 = por %p314, %p315
      %p317 = scmp.ne.s32.totalorder %s309, %s311
      %p318 = scmp.eq.s32.totalorder %s30, 1
      %p319 = por %p317, %p318
      %p320 = scmp.ne.s32.totalorder %s311, %s312
      %p321 = scmp.eq.s32.totalorder %s30, 0
      %p322 = por %p320, %p321
      %p323 = scmp.ne.s32.totalorder %s311, %s312
      %p324 = scmp.eq.s32.totalorder %s31, 1
      %p325 = por %p323, %p324
      %p327 = scmp.ne.s32.totalorder %s312, %s326
      %p328 = scmp.eq.s32.totalorder %s31, 0
      %p329 = por %p327, %p328
      %s331 = sadd.s32 %s330, 1
      %p334 = scmp.eq.s32.totalorder %s25, 1
      %p335 = scmp.ne.s32.totalorder %s330, %s332
      %p336 = scmp.eq.s32.totalorder %s25, 0
      %p337 = por %p335, %p336
      %p338 = scmp.ne.s32.totalorder %s330, %s332
      %p339 = scmp.eq.s32.totalorder %s30, 1
      %p340 = por %p338, %p339
      %p341 = scmp.ne.s32.totalorder %s332, %s333
      %p342 = scmp.eq.s32.totalorder %s30, 0
      %p343 = por %p341, %p342
      %p344 = scmp.ne.s32.totalorder %s332, %s333
      %p345 = scmp.eq.s32.totalorder %s31, 1
      %p346 = por %p344, %p345
      %p348 = scmp.ne.s32.totalorder %s333, %s347
      %p349 = scmp.eq.s32.totalorder %s31, 0
      %p350 = por %p348, %p349
      %s351 = ssub.s32 %s32, %s44
      %s352 = ssub.s32 %s33, %s40
      %s353 = sor.u32 %s351, %s352
      %p354 = scmp.eq.s32.totalorder %s353, 0
      %s356 = sadd.s32 %s355, 1
      %s357 = scalar_select %p354, %s355, %s356
      %p360 = pneg %p354
      %p361 = scmp.eq.s32.totalorder %s25, 1
      %p362 = por %p360, %p361
      %p363 = scmp.ne.s32.totalorder %s355, %s358
      %p364 = scmp.eq.s32.totalorder %s25, 0
      %p365 = por %p363, %p364
      %p366 = scmp.ne.s32.totalorder %s355, %s358
      %p367 = scmp.eq.s32.totalorder %s30, 1
      %p368 = por %p366, %p367
      %p369 = scmp.ne.s32.totalorder %s358, %s359
      %p370 = scmp.eq.s32.totalorder %s30, 0
      %p371 = por %p369, %p370
      %p372 = scmp.ne.s32.totalorder %s358, %s359
      %p373 = scmp.eq.s32.totalorder %s31, 1
      %p374 = por %p372, %p373
      %p376 = scmp.ne.s32.totalorder %s359, %s375
      %p377 = scmp.eq.s32.totalorder %s31, 0
      %p378 = por %p376, %p377
      %p379 = scmp.le.s32.totalorder 1, %s25
      %p380 = scmp.lt.s32.totalorder %s25, 3
      %p381 = pnand %p379, %p380
      %p382 = pneg %p381
      // Predicated region
      $region9: #{tpu_custom_call.1} parent=5 // pred_check
        _
      $region10: #{tpu_custom_call.1} parent=5 // pred_check_branch
        %384 = sbr.rel (%p381) target = $region12
      $region11: #{tpu_custom_call.1} parent=5 // pred_region
        %s385 = ssub.s32 %s25, 1
        // Predicated region
        $region13: #{tpu_custom_call.1} parent=11 // pred_check
          %p386 = pneg %p154
        $region14: #{tpu_custom_call.1} parent=11 // pred_check_branch
          %388 = sbr.rel (%p386) target = $region16
        $region15: #{tpu_custom_call.1} parent=11 // pred_region
          _
        $region16: #{tpu_custom_call.1} parent=11 // pred_fallthru
          _
        // Predicated region
        $region17: #{tpu_custom_call.1} parent=11 // pred_check
          %p389 = pneg %p175
        $region18: #{tpu_custom_call.1} parent=11 // pred_check_branch
          %391 = sbr.rel (%p389) target = $region20
        $region19: #{tpu_custom_call.1} parent=11 // pred_region
          _
        $region20: #{tpu_custom_call.1} parent=11 // pred_fallthru
          _
        // Predicated region
        $region21: #{tpu_custom_call.1} parent=11 // pred_check
          %p392 = pneg %p196
        $region22: #{tpu_custom_call.1} parent=11 // pred_check_branch
          %394 = sbr.rel (%p392) target = $region24
        $region23: #{tpu_custom_call.1} parent=11 // pred_region
          _
        $region24: #{tpu_custom_call.1} parent=11 // pred_fallthru
          _
        // Predicated region
        $region25: #{tpu_custom_call.1} parent=11 // pred_check
          %p395 = pneg %p217
        $region26: #{tpu_custom_call.1} parent=11 // pred_check_branch
          %397 = sbr.rel (%p395) target = $region28
        $region27: #{tpu_custom_call.1} parent=11 // pred_region
          _
        $region28: #{tpu_custom_call.1} parent=11 // pred_fallthru
          _
        // Predicated region
        $region29: #{tpu_custom_call.1} parent=11 // pred_check
          %p398 = pneg %p238
        $region30: #{tpu_custom_call.1} parent=11 // pred_check_branch
          %400 = sbr.rel (%p398) target = $region32
        $region31: #{tpu_custom_call.1} parent=11 // pred_region
          _
        $region32: #{tpu_custom_call.1} parent=11 // pred_fallthru
          _
        // Predicated region
        $region33: #{tpu_custom_call.1} parent=11 // pred_check
          %p401 = pneg %p259
        $region34: #{tpu_custom_call.1} parent=11 // pred_check_branch
          %403 = sbr.rel (%p401) target = $region36
        $region35: #{tpu_custom_call.1} parent=11 // pred_region
          _
        $region36: #{tpu_custom_call.1} parent=11 // pred_fallthru
          _
        // Predicated region
        $region37: #{tpu_custom_call.1} parent=11 // pred_check
          %p404 = pneg %p280
        $region38: #{tpu_custom_call.1} parent=11 // pred_check_branch
          %406 = sbr.rel (%p404) target = $region40
        $region39: #{tpu_custom_call.1} parent=11 // pred_region
          _
        $region40: #{tpu_custom_call.1} parent=11 // pred_fallthru
          _
        // Predicated region
        $region41: #{tpu_custom_call.1} parent=11 // pred_check
          %p407 = pneg %p301
        $region42: #{tpu_custom_call.1} parent=11 // pred_check_branch
          %409 = sbr.rel (%p407) target = $region44
        $region43: #{tpu_custom_call.1} parent=11 // pred_region
          _
        $region44: #{tpu_custom_call.1} parent=11 // pred_fallthru
          _
        // Predicated region
        $region45: #{tpu_custom_call.1} parent=11 // pred_check
          %p410 = pneg %p322
        $region46: #{tpu_custom_call.1} parent=11 // pred_check_branch
          %412 = sbr.rel (%p410) target = $region48
        $region47: #{tpu_custom_call.1} parent=11 // pred_region
          _
        $region48: #{tpu_custom_call.1} parent=11 // pred_fallthru
          _
        // Predicated region
        $region49: #{tpu_custom_call.1} parent=11 // pred_check
          %p413 = pneg %p343
        $region50: #{tpu_custom_call.1} parent=11 // pred_check_branch
          %415 = sbr.rel (%p413) target = $region52
        $region51: #{tpu_custom_call.1} parent=11 // pred_region
          _
        $region52: #{tpu_custom_call.1} parent=11 // pred_fallthru
          _
      $region12: #{tpu_custom_call.1} parent=5 // pred_fallthru
        _
      %p416 = scmp.lt.s32.totalorder %s25, 2
      // Predicated region
      $region53: #{tpu_custom_call.1} parent=5 // pred_check
        %p417 = pneg %p416
      $region54: #{tpu_custom_call.1} parent=5 // pred_check_branch
        %419 = sbr.rel (%p417) target = $region56
      $region55: #{tpu_custom_call.1} parent=5 // pred_region
        // Predicated region
        $region57: #{tpu_custom_call.1} parent=55 // pred_check
          %p420 = pneg %p59
        $region58: #{tpu_custom_call.1} parent=55 // pred_check_branch
          %422 = sbr.rel (%p420) target = $region60
        $region59: #{tpu_custom_call.1} parent=55 // pred_region
          %s423 = sand.u32 %s49, 1
          %s424 = scalar_lea.sflag [#allocation3], %s423
          %s425 = sand.u32 %s49, 1
          %s426 = smul.addr %s425, 8
          %s427 = scalar_lea.vmem [#allocation2], %s426
          %s429 = ssub.s32 128, 128
          %430 = vsyncadd %s424, %s429
          %s431 = sadd.s32 %s33, %s32
          %s432 = smul.addr %s431, 128
          %s433 = scalar_lea.hbm %s0, %s432
          %s435 = sshll.u32 %s427, 4
          %s436 = int_to_ptr.vmem [resolvable:$true] %s435
          %438 = dma.hbm_to_vmem [thread:$0]  %s433, 128, %s436, %s424
        $region60: #{tpu_custom_call.1} parent=55 // pred_fallthru
          _
        // Predicated region
        $region61: #{tpu_custom_call.1} parent=55 // pred_check
          %p439 = pneg %p93
        $region62: #{tpu_custom_call.1} parent=55 // pred_check_branch
          %441 = sbr.rel (%p439) target = $region64
        $region63: #{tpu_custom_call.1} parent=55 // pred_region
          %s442 = sand.u32 %s25, 1
          %s443 = scalar_lea.sflag [#allocation5], %s442
          %s444 = sand.u32 %s83, 1
          %s445 = smul.addr %s444, 8
          %s446 = scalar_lea.vmem [#allocation4], %s445
          %s447 = ssub.s32 %s33, 1
          %p448 = scmp.gt.s32.totalorder %s447, 0
          %s449 = scalar_select %p448, %s447, 0
          %s451 = ssub.s32 128, 128
          %452 = vsyncadd %s443, %s451
          %s453 = sadd.s32 %s449, %s32
          %s454 = smul.addr %s453, 128
          %s455 = scalar_lea.hbm %s1, %s454
          %s457 = sshll.u32 %s446, 4
          %s458 = int_to_ptr.vmem [resolvable:$true] %s457
          %460 = dma.hbm_to_vmem [thread:$0]  %s455, 128, %s458, %s443
        $region64: #{tpu_custom_call.1} parent=55 // pred_fallthru
          _
        // Predicated region
        $region65: #{tpu_custom_call.1} parent=55 // pred_check
          %p461 = pneg %p127
        $region66: #{tpu_custom_call.1} parent=55 // pred_check_branch
          %463 = sbr.rel (%p461) target = $region68
        $region67: #{tpu_custom_call.1} parent=55 // pred_region
          %s464 = sand.u32 %s25, 1
          %s465 = scalar_lea.sflag [#allocation5], %s464
          %s466 = sand.u32 %s117, 1
          %s467 = smul.addr %s466, 8
          %s468 = scalar_lea.vmem [#allocation6], %s467
          %s469 = sadd.s32 %s33, 1
          %p470 = scmp.lt.s32.totalorder %s469, 0
          %s471 = scalar_select %p470, %s469, 0
          %s473 = ssub.s32 128, 128
          %474 = vsyncadd %s465, %s473
          %s475 = sadd.s32 %s471, %s32
          %s476 = smul.addr %s475, 128
          %s477 = scalar_lea.hbm %s2, %s476
          %s479 = sshll.u32 %s468, 4
          %s480 = int_to_ptr.vmem [resolvable:$true] %s479
          %482 = dma.hbm_to_vmem [thread:$0]  %s477, 128, %s480, %s465
        $region68: #{tpu_custom_call.1} parent=55 // pred_fallthru
          _
      $region56: #{tpu_custom_call.1} parent=5 // pred_fallthru
        _
      %p483 = scmp.le.s32.totalorder 1, %s25
      %p484 = scmp.lt.s32.totalorder %s25, 3
      %p485 = pnand %p483, %p484
      %p486 = pneg %p485
      // Predicated region
      $region69: #{tpu_custom_call.1} parent=5 // pred_check
        _
      $region70: #{tpu_custom_call.1} parent=5 // pred_check_branch
        %488 = sbr.rel (%p485) target = $region72
      $region71: #{tpu_custom_call.1} parent=5 // pred_region
        %s489 = ssub.s32 %s25, 1
        %s490 = sand.u32 %s52, 1
        %s491 = scalar_lea.sflag [#allocation3], %s490
        %s492 = sand.u32 %s52, 1
        %s493 = smul.addr %s492, 8
        %s494 = scalar_lea.vmem [#allocation2], %s493
        // Predicated region
        $region73: #{tpu_custom_call.1} parent=71 // pred_check
          %p495 = pneg %p65
        $region74: #{tpu_custom_call.1} parent=71 // pred_check_branch
          %497 = sbr.rel (%p495) target = $region76
        $region75: #{tpu_custom_call.1} parent=71 // pred_region
          %498 = dma.done %s491, 128
        $region76: #{tpu_custom_call.1} parent=71 // pred_fallthru
          _
        %s499 = sand.u32 %s30, 1
        %s500 = scalar_lea.sflag [#allocation5], %s499
        %s501 = sand.u32 %s86, 1
        %s502 = smul.addr %s501, 8
        %s503 = scalar_lea.vmem [#allocation4], %s502
        // Predicated region
        $region77: #{tpu_custom_call.1} parent=71 // pred_check
          %p504 = pneg %p99
        $region78: #{tpu_custom_call.1} parent=71 // pred_check_branch
          %506 = sbr.rel (%p504) target = $region80
        $region79: #{tpu_custom_call.1} parent=71 // pred_region
          %507 = dma.done %s500, 128
        $region80: #{tpu_custom_call.1} parent=71 // pred_fallthru
          _
        %s508 = sand.u32 %s30, 1
        %s509 = scalar_lea.sflag [#allocation5], %s508
        %s510 = sand.u32 %s120, 1
        %s511 = smul.addr %s510, 8
        %s512 = scalar_lea.vmem [#allocation6], %s511
        // Predicated region
        $region81: #{tpu_custom_call.1} parent=71 // pred_check
          %p513 = pneg %p133
        $region82: #{tpu_custom_call.1} parent=71 // pred_check_branch
          %515 = sbr.rel (%p513) target = $region84
        $region83: #{tpu_custom_call.1} parent=71 // pred_region
          %516 = dma.done %s509, 128
        $region84: #{tpu_custom_call.1} parent=71 // pred_fallthru
          _
        %s517 = sand.u32 %s52, 1
        %s518 = scalar_lea.sflag [#allocation3], %s517
        %s519 = sand.u32 %s52, 1
        %s520 = smul.addr %s519, 8
        %s521 = scalar_lea.vmem [#allocation2], %s520
        %p522 = pneg %p65
        %p523 = pneg %p62
        %s524 = sand.u32 %s30, 1
        %s525 = scalar_lea.sflag [#allocation5], %s524
        %s526 = sand.u32 %s86, 1
        %s527 = smul.addr %s526, 8
        %s528 = scalar_lea.vmem [#allocation4], %s527
        %p529 = pneg %p99
        %p530 = pneg %p96
        %s531 = sand.u32 %s30, 1
        %s532 = scalar_lea.sflag [#allocation5], %s531
        %s533 = sand.u32 %s120, 1
        %s534 = smul.addr %s533, 8
        %s535 = scalar_lea.vmem [#allocation6], %s534
        %p536 = pneg %p133
        %p537 = pneg %p130
        %p538 = pneg %p154
        %p539 = pneg %p151
        %p540 = pneg %p175
        %p541 = pneg %p172
        %p542 = pneg %p196
        %p543 = pneg %p193
        %p544 = pneg %p217
        %p545 = pneg %p214
        %p546 = pneg %p238
        %p547 = pneg %p235
        %p548 = pneg %p259
        %p549 = pneg %p256
        %p550 = pneg %p280
        %p551 = pneg %p277
        %p552 = pneg %p301
        %p553 = pneg %p298
        %p554 = pneg %p322
        %p555 = pneg %p319
        %p556 = pneg %p343
        %p557 = pneg %p340
        %p558 = pneg %p371
        %p559 = pneg %p368
        %p560 = scmp.lt.s32.totalorder %s34, 1
        %s561 = scalar_select %p560, %s34, 1
        %p562 = scmp.lt.s32.totalorder %s35, 0
        %s563 = scalar_select %p562, %s35, 0
        %s564 = smul.addr %s561, 4
        %s565 = sadd.s32 %s563, %s564
        %s566 = smul.addr %s565, 8
        %s567 = scalar_lea.vmem %s13, %s566
        %s568 = ssub.s32 %s35, 1
        %p569 = scmp.gt.s32.totalorder %s568, 0
        %s570 = scalar_select %p569, %s568, 0
        %s571 = sadd.s32 %s35, 1
        %p572 = scmp.lt.s32.totalorder %s571, 0
        %s573 = scalar_select %p572, %s571, 0
        %p574 = scmp.lt.s32.totalorder %s34, 1
        %s575 = scalar_select %p574, %s34, 1
        %p576 = scmp.lt.s32.totalorder %s35, 0
        %s577 = scalar_select %p576, %s35, 0
        %s578 = smul.addr %s575, 4
        %s579 = sadd.s32 %s577, %s578
        %s580 = smul.addr %s579, 8
        %s581 = scalar_lea.vmem %s13, %s580
        %v582 = vld [vmem:[%s494] sm:$0xff]
        %v583 = vld [vmem:[%s503] sm:$0xff]
        %v584 = vld [vmem:[%s512] sm:$0xff]
        %p585 = scmp.eq.s32.totalorder %s35, 0
        %s586 = scalar_select %p585, 1, 0
        %v587 = vstv %s586
        %vm588 = vcmp.eq.s32.totalorder %v587, 1
        %v589 = vsel %vm588, 0.0, %v583
        %v590 = vsel %vm588, 0.0, %v584
        %592 = vrot.lane.b32.xlu0 %v589, 114
        %v593 = vpop.permute.xlu0 %592
        %596 = vrot.lane.b32.xlu0 %v582, 2
        %v597 = vpop.permute.xlu0 %596
        %600 = vrot.lane.b32.xlu0 %v590, 18
        %v601 = vpop.permute.xlu0 %600
        %vm603 = vcmask 15360
        %v604 = vsel %vm603, %v593, %v597
        %vm605 = vcmask 146432
        %v606 = vsel %vm605, %v604, %v601
        %s607 = smul.u32 %s35, 16
        %v608 = vlaneseq
        %v609 = vand.u32 %v608, 127
        %v610 = vstv %s607
        %v611 = vadd.s32 %v610, %v609
        %v612 = vsub.s32 %v611, 2
        %vm613 = vcmp.ge.s32.totalorder %v612, 0
        %vm614 = vcmp.lt.s32.totalorder %v612, 16
        %vm615 = vmand %vm613, %vm614
        %v616 = vsel %vm615, 1, 0
        %v617 = vcvt.s32.f32 %v616
        %v618 = vld [vmem:[%s3] sm:$0xff]
        %v619 = vld [vmem:[%s3 + $0x8] sm:$0xff]
        %v620 = vld [vmem:[%s3 + $0x10] sm:$0xff]
        %v621 = vld [vmem:[%s4] sm:$0xff]
        %v622 = vld [vmem:[%s4 + $0x8] sm:$0xff]
        %v623 = vld [vmem:[%s4 + $0x10] sm:$0xff]
        %625 = vset.pattern.permute.xlu0 0
        %626 = vperm.xlu0 %625, %v621
        %v627 = vpop.permute.xlu0 %626
        %630 = vset.pattern.permute.xlu0 0
        %631 = vperm.xlu0 %630, %v622
        %v632 = vpop.permute.xlu0 %631
        %635 = vset.pattern.permute.xlu0 0
        %636 = vperm.xlu0 %635, %v623
        %v637 = vpop.permute.xlu0 %636
        %vm639 = vcmask 64512
        %v641 = vsel %vm639, %v618, 0
        %v644 = vsel %vm639, %v619, 0
        %v647 = vsel %vm639, %v620, 0
        %649 = vmatprep.subr.mxu0 0.0
        %650 = vmatpush1.msra.mxu0 %v606
        %651 = vmatprep.subr.mxu0 0.0
        %652 = vmatpush1.msra.mxu0 0.0
        %653 = vmatprep.subr.mxu0 0.0
        %654 = vmatpush1.msra.mxu0 0.0
        %655 = vmatprep.subr.mxu0 0.0
        %656 = vmatpush1.msra.mxu0 0.0
        %657 = vmatprep.subr.mxu0 0.0
        %658 = vmatpush1.msra.mxu0 0.0
        %659 = vmatprep.subr.mxu0 0.0
        %660 = vmatpush1.msra.mxu0 0.0
        %661 = vmatprep.subr.mxu0 0.0
        %662 = vmatpush1.msra.mxu0 0.0
        %663 = vmatprep.subr.mxu0 0.0
        %664 = vmatpush1.msra.mxu0 0.0
        %665 = vmatprep.subr.mxu0 0.0
        %666 = vmatpush1.msra.mxu0 0.0
        %667 = vmatprep.subr.mxu0 0.0
        %668 = vmatpush1.msra.mxu0 0.0
        %669 = vmatprep.subr.mxu0 0.0
        %670 = vmatpush1.msra.mxu0 0.0
        %671 = vmatprep.subr.mxu0 0.0
        %672 = vmatpush1.msra.mxu0 0.0
        %673 = vmatprep.subr.mxu0 0.0
        %674 = vmatpush1.msra.mxu0 0.0
        %675 = vmatprep.subr.mxu0 0.0
        %676 = vmatpush1.msra.mxu0 0.0
        %677 = vmatprep.subr.mxu0 0.0
        %678 = vmatpush1.msra.mxu0 0.0
        %679 = vmatprep.subr.mxu0 0.0
        %680 = vmatpush1.msra.mxu0 0.0
        %681 = vmatprep.subr.mxu0 0.0
        %682 = vmatpush1.msra.mxu0 0.0
        %683 = vmatprep.subr.mxu0 0.0
        %684 = vmatpush1.msra.mxu0 0.0
        %685 = vmatprep.subr.mxu0 0.0
        %686 = vmatpush1.msra.mxu0 0.0
        %687 = vmatprep.subr.mxu0 0.0
        %688 = vmatpush1.msra.mxu0 0.0
        %689 = vmatprep.subr.mxu0 0.0
        %690 = vmatpush1.msra.mxu0 0.0
        %691 = vmatprep.subr.mxu0 0.0
        %692 = vmatpush1.msra.mxu0 0.0
        %693 = vmatprep.subr.mxu0 0.0
        %694 = vmatpush1.msra.mxu0 0.0
        %695 = vmatprep.subr.mxu0 0.0
        %696 = vmatpush1.msra.mxu0 0.0
        %697 = vmatprep.subr.mxu0 0.0
        %698 = vmatpush1.msra.mxu0 0.0
        %699 = vmatprep.subr.mxu0 0.0
        %700 = vmatpush1.msra.mxu0 0.0
        %701 = vmatprep.subr.mxu0 0.0
        %702 = vmatpush1.msra.mxu0 0.0
        %703 = vmatprep.subr.mxu0 0.0
        %704 = vmatpush1.msra.mxu0 0.0
        %705 = vmatprep.subr.mxu0 0.0
        %706 = vmatpush1.msra.mxu0 0.0
        %707 = vmatprep.subr.mxu0 0.0
        %708 = vmatpush1.msra.mxu0 0.0
        %709 = vmatprep.subr.mxu0 0.0
        %710 = vmatpush1.msra.mxu0 0.0
        %711 = vmatprep.subr.mxu0 0.0
        %712 = vmatpush1.msra.mxu0 0.0
        %713 = vmatprep.mubr.f32.mxu0 0.0
        %714 = vmatmul.mubr.f32.gmra.mrb[0].mxu0 %v641
        %v715 = vpop.f32.mrb[0].mxu0
        %v716 = vadd.f32 %v627, %v715
        %v717 = vpop.f32.mrb[0].mxu0
        %718 = vmatprep.mubr.f32.mxu0 0.0
        %719 = vmatmul.mubr.f32.gmra.mrb[0].mxu0 %v644
        %v720 = vpop.f32.mrb[0].mxu0
        %v721 = vadd.f32 %v632, %v720
        %v722 = vpop.f32.mrb[0].mxu0
        %723 = vmatprep.mubr.f32.mxu0 0.0
        %724 = vmatmul.mubr.f32.gmra.mrb[0].mxu0 %v647
        %v725 = vpop.f32.mrb[0].mxu0
        %v726 = vadd.f32 %v637, %v725
        %v727 = vpop.f32.mrb[0].mxu0
        %728 = vdwg.mxu0
        %v729 = vmax.f32 %v716, 0.0
        %v730 = vmax.f32 %v721, 0.0
        %v731 = vmax.f32 %v726, 0.0
        %v732 = vmin.f32 %v729, 6.0
        %v733 = vmin.f32 %v730, 6.0
        %v734 = vmin.f32 %v731, 6.0
        %v735 = vmul.f32 %v733, %v617
        %v736 = vmul.f32 %v734, %v617
        %v737 = vld [vmem:[%s5] sm:$0xff]
        %s738 = scalar_lea.vmem %s5, 8
        %v739 = vld [vmem:[%s738] sm:$0xff]
        %741 = vrot.lane.b32.xlu0 %v735, 127
        %v742 = vpop.permute.xlu0 %741
        %v745 = vsel %vm639, %v739, 0
        %747 = vmatprep.subr.mxu0 0.0
        %748 = vmatpush1.msra.mxu0 %v742
        %749 = vmatprep.subr.mxu0 0.0
        %750 = vmatpush1.msra.mxu0 0.0
        %751 = vmatprep.subr.mxu0 0.0
        %752 = vmatpush1.msra.mxu0 0.0
        %753 = vmatprep.subr.mxu0 0.0
        %754 = vmatpush1.msra.mxu0 0.0
        %755 = vmatprep.subr.mxu0 0.0
        %756 = vmatpush1.msra.mxu0 0.0
        %757 = vmatprep.subr.mxu0 0.0
        %758 = vmatpush1.msra.mxu0 0.0
        %759 = vmatprep.subr.mxu0 0.0
        %760 = vmatpush1.msra.mxu0 0.0
        %761 = vmatprep.subr.mxu0 0.0
        %762 = vmatpush1.msra.mxu0 0.0
        %763 = vmatprep.subr.mxu0 0.0
        %764 = vmatpush1.msra.mxu0 0.0
        %765 = vmatprep.subr.mxu0 0.0
        %766 = vmatpush1.msra.mxu0 0.0
        %767 = vmatprep.subr.mxu0 0.0
        %768 = vmatpush1.msra.mxu0 0.0
        %769 = vmatprep.subr.mxu0 0.0
        %770 = vmatpush1.msra.mxu0 0.0
        %771 = vmatprep.subr.mxu0 0.0
        %772 = vmatpush1.msra.mxu0 0.0
        %773 = vmatprep.subr.mxu0 0.0
        %774 = vmatpush1.msra.mxu0 0.0
        %775 = vmatprep.subr.mxu0 0.0
        %776 = vmatpush1.msra.mxu0 0.0
        %777 = vmatprep.subr.mxu0 0.0
        %778 = vmatpush1.msra.mxu0 0.0
        %779 = vmatprep.subr.mxu0 0.0
        %780 = vmatpush1.msra.mxu0 0.0
        %781 = vmatprep.subr.mxu0 0.0
        %782 = vmatpush1.msra.mxu0 0.0
        %783 = vmatprep.subr.mxu0 0.0
        %784 = vmatpush1.msra.mxu0 0.0
        %785 = vmatprep.subr.mxu0 0.0
        %786 = vmatpush1.msra.mxu0 0.0
        %787 = vmatprep.subr.mxu0 0.0
        %788 = vmatpush1.msra.mxu0 0.0
        %789 = vmatprep.subr.mxu0 0.0
        %790 = vmatpush1.msra.mxu0 0.0
        %791 = vmatprep.subr.mxu0 0.0
        %792 = vmatpush1.msra.mxu0 0.0
        %793 = vmatprep.subr.mxu0 0.0
        %794 = vmatpush1.msra.mxu0 0.0
        %795 = vmatprep.subr.mxu0 0.0
        %796 = vmatpush1.msra.mxu0 0.0
        %797 = vmatprep.subr.mxu0 0.0
        %798 = vmatpush1.msra.mxu0 0.0
        %799 = vmatprep.subr.mxu0 0.0
        %800 = vmatpush1.msra.mxu0 0.0
        %801 = vmatprep.subr.mxu0 0.0
        %802 = vmatpush1.msra.mxu0 0.0
        %803 = vmatprep.subr.mxu0 0.0
        %804 = vmatpush1.msra.mxu0 0.0
        %805 = vmatprep.subr.mxu0 0.0
        %806 = vmatpush1.msra.mxu0 0.0
        %807 = vmatprep.subr.mxu0 0.0
        %808 = vmatpush1.msra.mxu0 0.0
        %809 = vmatprep.subr.mxu0 0.0
        %810 = vmatpush1.msra.mxu0 0.0
        %811 = vmatprep.mubr.f32.mxu0 0.0
        %812 = vmatmul.mubr.f32.gmra.mrb[0].mxu0 %v745
        %v813 = vpop.f32.mrb[0].mxu0
        %v814 = vadd.f32 0.0, %v813
        %v815 = vpop.f32.mrb[0].mxu0
        %816 = vdwg.mxu0
        %v818 = vsel %vm639, %v737, 0
        %820 = vmatprep.subr.mxu0 0.0
        %821 = vmatpush1.msra.mxu0 %v735
        %822 = vmatprep.subr.mxu0 0.0
        %823 = vmatpush1.msra.mxu0 0.0
        %824 = vmatprep.subr.mxu0 0.0
        %825 = vmatpush1.msra.mxu0 0.0
        %826 = vmatprep.subr.mxu0 0.0
        %827 = vmatpush1.msra.mxu0 0.0
        %828 = vmatprep.subr.mxu0 0.0
        %829 = vmatpush1.msra.mxu0 0.0
        %830 = vmatprep.subr.mxu0 0.0
        %831 = vmatpush1.msra.mxu0 0.0
        %832 = vmatprep.subr.mxu0 0.0
        %833 = vmatpush1.msra.mxu0 0.0
        %834 = vmatprep.subr.mxu0 0.0
        %835 = vmatpush1.msra.mxu0 0.0
        %836 = vmatprep.subr.mxu0 0.0
        %837 = vmatpush1.msra.mxu0 0.0
        %838 = vmatprep.subr.mxu0 0.0
        %839 = vmatpush1.msra.mxu0 0.0
        %840 = vmatprep.subr.mxu0 0.0
        %841 = vmatpush1.msra.mxu0 0.0
        %842 = vmatprep.subr.mxu0 0.0
        %843 = vmatpush1.msra.mxu0 0.0
        %844 = vmatprep.subr.mxu0 0.0
        %845 = vmatpush1.msra.mxu0 0.0
        %846 = vmatprep.subr.mxu0 0.0
        %847 = vmatpush1.msra.mxu0 0.0
        %848 = vmatprep.subr.mxu0 0.0
        %849 = vmatpush1.msra.mxu0 0.0
        %850 = vmatprep.subr.mxu0 0.0
        %851 = vmatpush1.msra.mxu0 0.0
        %852 = vmatprep.subr.mxu0 0.0
        %853 = vmatpush1.msra.mxu0 0.0
        %854 = vmatprep.subr.mxu0 0.0
        %855 = vmatpush1.msra.mxu0 0.0
        %856 = vmatprep.subr.mxu0 0.0
        %857 = vmatpush1.msra.mxu0 0.0
        %858 = vmatprep.subr.mxu0 0.0
        %859 = vmatpush1.msra.mxu0 0.0
        %860 = vmatprep.subr.mxu0 0.0
        %861 = vmatpush1.msra.mxu0 0.0
        %862 = vmatprep.subr.mxu0 0.0
        %863 = vmatpush1.msra.mxu0 0.0
        %864 = vmatprep.subr.mxu0 0.0
        %865 = vmatpush1.msra.mxu0 0.0
        %866 = vmatprep.subr.mxu0 0.0
        %867 = vmatpush1.msra.mxu0 0.0
        %868 = vmatprep.subr.mxu0 0.0
        %869 = vmatpush1.msra.mxu0 0.0
        %870 = vmatprep.subr.mxu0 0.0
        %871 = vmatpush1.msra.mxu0 0.0
        %872 = vmatprep.subr.mxu0 0.0
        %873 = vmatpush1.msra.mxu0 0.0
        %874 = vmatprep.subr.mxu0 0.0
        %875 = vmatpush1.msra.mxu0 0.0
        %876 = vmatprep.subr.mxu0 0.0
        %877 = vmatpush1.msra.mxu0 0.0
        %878 = vmatprep.subr.mxu0 0.0
        %879 = vmatpush1.msra.mxu0 0.0
        %880 = vmatprep.subr.mxu0 0.0
        %881 = vmatpush1.msra.mxu0 0.0
        %882 = vmatprep.subr.mxu0 0.0
        %883 = vmatpush1.msra.mxu0 0.0
        %884 = vmatprep.mubr.f32.mxu0 0.0
        %885 = vmatmul.mubr.f32.gmra.mrb[0].mxu0 %v818
        %v886 = vpop.f32.mrb[0].mxu0
        %v887 = vadd.f32 %v814, %v886
        %v888 = vpop.f32.mrb[0].mxu0
        %889 = vdwg.mxu0
        %s890 = scalar_lea.vmem %s5, 16
        %v891 = vld [vmem:[%s890] sm:$0xff]
        %892 = vrot.lane.b32.xlu0 %v735, 126
        %v893 = vpop.permute.xlu0 %892
        %v896 = vsel %vm639, %v891, 0
        %898 = vmatprep.subr.mxu0 0.0
        %899 = vmatpush1.msra.mxu0 %v893
        %900 = vmatprep.subr.mxu0 0.0
        %901 = vmatpush1.msra.mxu0 0.0
        %902 = vmatprep.subr.mxu0 0.0
        %903 = vmatpush1.msra.mxu0 0.0
        %904 = vmatprep.subr.mxu0 0.0
        %905 = vmatpush1.msra.mxu0 0.0
        %906 = vmatprep.subr.mxu0 0.0
        %907 = vmatpush1.msra.mxu0 0.0
        %908 = vmatprep.subr.mxu0 0.0
        %909 = vmatpush1.msra.mxu0 0.0
        %910 = vmatprep.subr.mxu0 0.0
        %911 = vmatpush1.msra.mxu0 0.0
        %912 = vmatprep.subr.mxu0 0.0
        %913 = vmatpush1.msra.mxu0 0.0
        %914 = vmatprep.subr.mxu0 0.0
        %915 = vmatpush1.msra.mxu0 0.0
        %916 = vmatprep.subr.mxu0 0.0
        %917 = vmatpush1.msra.mxu0 0.0
        %918 = vmatprep.subr.mxu0 0.0
        %919 = vmatpush1.msra.mxu0 0.0
        %920 = vmatprep.subr.mxu0 0.0
        %921 = vmatpush1.msra.mxu0 0.0
        %922 = vmatprep.subr.mxu0 0.0
        %923 = vmatpush1.msra.mxu0 0.0
        %924 = vmatprep.subr.mxu0 0.0
        %925 = vmatpush1.msra.mxu0 0.0
        %926 = vmatprep.subr.mxu0 0.0
        %927 = vmatpush1.msra.mxu0 0.0
        %928 = vmatprep.subr.mxu0 0.0
        %929 = vmatpush1.msra.mxu0 0.0
        %930 = vmatprep.subr.mxu0 0.0
        %931 = vmatpush1.msra.mxu0 0.0
        %932 = vmatprep.subr.mxu0 0.0
        %933 = vmatpush1.msra.mxu0 0.0
        %934 = vmatprep.subr.mxu0 0.0
        %935 = vmatpush1.msra.mxu0 0.0
        %936 = vmatprep.subr.mxu0 0.0
        %937 = vmatpush1.msra.mxu0 0.0
        %938 = vmatprep.subr.mxu0 0.0
        %939 = vmatpush1.msra.mxu0 0.0
        %940 = vmatprep.subr.mxu0 0.0
        %941 = vmatpush1.msra.mxu0 0.0
        %942 = vmatprep.subr.mxu0 0.0
        %943 = vmatpush1.msra.mxu0 0.0
        %944 = vmatprep.subr.mxu0 0.0
        %945 = vmatpush1.msra.mxu0 0.0
        %946 = vmatprep.subr.mxu0 0.0
        %947 = vmatpush1.msra.mxu0 0.0
        %948 = vmatprep.subr.mxu0 0.0
        %949 = vmatpush1.msra.mxu0 0.0
        %950 = vmatprep.subr.mxu0 0.0
        %951 = vmatpush1.msra.mxu0 0.0
        %952 = vmatprep.subr.mxu0 0.0
        %953 = vmatpush1.msra.mxu0 0.0
        %954 = vmatprep.subr.mxu0 0.0
        %955 = vmatpush1.msra.mxu0 0.0
        %956 = vmatprep.subr.mxu0 0.0
        %957 = vmatpush1.msra.mxu0 0.0
        %958 = vmatprep.subr.mxu0 0.0
        %959 = vmatpush1.msra.mxu0 0.0
        %960 = vmatprep.subr.mxu0 0.0
        %961 = vmatpush1.msra.mxu0 0.0
        %962 = vmatprep.mubr.f32.mxu0 0.0
        %963 = vmatmul.mubr.f32.gmra.mrb[0].mxu0 %v896
        %v964 = vpop.f32.mrb[0].mxu0
        %v965 = vadd.f32 0.0, %v964
        %v966 = vpop.f32.mrb[0].mxu0
        %967 = vdwg.mxu0
        %v968 = vadd.f32 %v887, %v965
        %s969 = scalar_lea.vmem %s5, 24
        %v970 = vld [vmem:[%s969] sm:$0xff]
        %971 = vrot.lane.b32.xlu0 %v735, 125
        %v972 = vpop.permute.xlu0 %971
        %v975 = vsel %vm639, %v970, 0
        %977 = vmatprep.subr.mxu0 0.0
        %978 = vmatpush1.msra.mxu0 %v972
        %979 = vmatprep.subr.mxu0 0.0
        %980 = vmatpush1.msra.mxu0 0.0
        %981 = vmatprep.subr.mxu0 0.0
        %982 = vmatpush1.msra.mxu0 0.0
        %983 = vmatprep.subr.mxu0 0.0
        %984 = vmatpush1.msra.mxu0 0.0
        %985 = vmatprep.subr.mxu0 0.0
        %986 = vmatpush1.msra.mxu0 0.0
        %987 = vmatprep.subr.mxu0 0.0
        %988 = vmatpush1.msra.mxu0 0.0
        %989 = vmatprep.subr.mxu0 0.0
        %990 = vmatpush1.msra.mxu0 0.0
        %991 = vmatprep.subr.mxu0 0.0
        %992 = vmatpush1.msra.mxu0 0.0
        %993 = vmatprep.subr.mxu0 0.0
        %994 = vmatpush1.msra.mxu0 0.0
        %995 = vmatprep.subr.mxu0 0.0
        %996 = vmatpush1.msra.mxu0 0.0
        %997 = vmatprep.subr.mxu0 0.0
        %998 = vmatpush1.msra.mxu0 0.0
        %999 = vmatprep.subr.mxu0 0.0
        %1000 = vmatpush1.msra.mxu0 0.0
        %1001 = vmatprep.subr.mxu0 0.0
        %1002 = vmatpush1.msra.mxu0 0.0
        %1003 = vmatprep.subr.mxu0 0.0
        %1004 = vmatpush1.msra.mxu0 0.0
        %1005 = vmatprep.subr.mxu0 0.0
        %1006 = vmatpush1.msra.mxu0 0.0
        %1007 = vmatprep.subr.mxu0 0.0
        %1008 = vmatpush1.msra.mxu0 0.0
        %1009 = vmatprep.subr.mxu0 0.0
        %1010 = vmatpush1.msra.mxu0 0.0
        %1011 = vmatprep.subr.mxu0 0.0
        %1012 = vmatpush1.msra.mxu0 0.0
        %1013 = vmatprep.subr.mxu0 0.0
        %1014 = vmatpush1.msra.mxu0 0.0
        %1015 = vmatprep.subr.mxu0 0.0
        %1016 = vmatpush1.msra.mxu0 0.0
        %1017 = vmatprep.subr.mxu0 0.0
        %1018 = vmatpush1.msra.mxu0 0.0
        %1019 = vmatprep.subr.mxu0 0.0
        %1020 = vmatpush1.msra.mxu0 0.0
        %1021 = vmatprep.subr.mxu0 0.0
        %1022 = vmatpush1.msra.mxu0 0.0
        %1023 = vmatprep.subr.mxu0 0.0
        %1024 = vmatpush1.msra.mxu0 0.0
        %1025 = vmatprep.subr.mxu0 0.0
        %1026 = vmatpush1.msra.mxu0 0.0
        %1027 = vmatprep.subr.mxu0 0.0
        %1028 = vmatpush1.msra.mxu0 0.0
        %1029 = vmatprep.subr.mxu0 0.0
        %1030 = vmatpush1.msra.mxu0 0.0
        %1031 = vmatprep.subr.mxu0 0.0
        %1032 = vmatpush1.msra.mxu0 0.0
        %1033 = vmatprep.subr.mxu0 0.0
        %1034 = vmatpush1.msra.mxu0 0.0
        %1035 = vmatprep.subr.mxu0 0.0
        %1036 = vmatpush1.msra.mxu0 0.0
        %1037 = vmatprep.subr.mxu0 0.0
        %1038 = vmatpush1.msra.mxu0 0.0
        %1039 = vmatprep.subr.mxu0 0.0
        %1040 = vmatpush1.msra.mxu0 0.0
        %1041 = vmatprep.mubr.f32.mxu0 0.0
        %1042 = vmatmul.mubr.f32.gmra.mrb[0].mxu0 %v975
        %v1043 = vpop.f32.mrb[0].mxu0
        %v1044 = vadd.f32 0.0, %v1043
        %v1045 = vpop.f32.mrb[0].mxu0
        %1046 = vdwg.mxu0
        %v1047 = vadd.f32 %v968, %v1044
        %s1048 = scalar_lea.vmem %s5, 32
        %v1049 = vld [vmem:[%s1048] sm:$0xff]
        %1050 = vrot.lane.b32.xlu0 %v735, 124
        %v1051 = vpop.permute.xlu0 %1050
        %v1054 = vsel %vm639, %v1049, 0
        %1056 = vmatprep.subr.mxu0 0.0
        %1057 = vmatpush1.msra.mxu0 %v1051
        %1058 = vmatprep.subr.mxu0 0.0
        %1059 = vmatpush1.msra.mxu0 0.0
        %1060 = vmatprep.subr.mxu0 0.0
        %1061 = vmatpush1.msra.mxu0 0.0
        %1062 = vmatprep.subr.mxu0 0.0
        %1063 = vmatpush1.msra.mxu0 0.0
        %1064 = vmatprep.subr.mxu0 0.0
        %1065 = vmatpush1.msra.mxu0 0.0
        %1066 = vmatprep.subr.mxu0 0.0
        %1067 = vmatpush1.msra.mxu0 0.0
        %1068 = vmatprep.subr.mxu0 0.0
        %1069 = vmatpush1.msra.mxu0 0.0
        %1070 = vmatprep.subr.mxu0 0.0
        %1071 = vmatpush1.msra.mxu0 0.0
        %1072 = vmatprep.subr.mxu0 0.0
        %1073 = vmatpush1.msra.mxu0 0.0
        %1074 = vmatprep.subr.mxu0 0.0
        %1075 = vmatpush1.msra.mxu0 0.0
        %1076 = vmatprep.subr.mxu0 0.0
        %1077 = vmatpush1.msra.mxu0 0.0
        %1078 = vmatprep.subr.mxu0 0.0
        %1079 = vmatpush1.msra.mxu0 0.0
        %1080 = vmatprep.subr.mxu0 0.0
        %1081 = vmatpush1.msra.mxu0 0.0
        %1082 = vmatprep.subr.mxu0 0.0
        %1083 = vmatpush1.msra.mxu0 0.0
        %1084 = vmatprep.subr.mxu0 0.0
        %1085 = vmatpush1.msra.mxu0 0.0
        %1086 = vmatprep.subr.mxu0 0.0
        %1087 = vmatpush1.msra.mxu0 0.0
        %1088 = vmatprep.subr.mxu0 0.0
        %1089 = vmatpush1.msra.mxu0 0.0
        %1090 = vmatprep.subr.mxu0 0.0
        %1091 = vmatpush1.msra.mxu0 0.0
        %1092 = vmatprep.subr.mxu0 0.0
        %1093 = vmatpush1.msra.mxu0 0.0
        %1094 = vmatprep.subr.mxu0 0.0
        %1095 = vmatpush1.msra.mxu0 0.0
        %1096 = vmatprep.subr.mxu0 0.0
        %1097 = vmatpush1.msra.mxu0 0.0
        %1098 = vmatprep.subr.mxu0 0.0
        %1099 = vmatpush1.msra.mxu0 0.0
        %1100 = vmatprep.subr.mxu0 0.0
        %1101 = vmatpush1.msra.mxu0 0.0
        %1102 = vmatprep.subr.mxu0 0.0
        %1103 = vmatpush1.msra.mxu0 0.0
        %1104 = vmatprep.subr.mxu0 0.0
        %1105 = vmatpush1.msra.mxu0 0.0
        %1106 = vmatprep.subr.mxu0 0.0
        %1107 = vmatpush1.msra.mxu0 0.0
        %1108 = vmatprep.subr.mxu0 0.0
        %1109 = vmatpush1.msra.mxu0 0.0
        %1110 = vmatprep.subr.mxu0 0.0
        %1111 = vmatpush1.msra.mxu0 0.0
        %1112 = vmatprep.subr.mxu0 0.0
        %1113 = vmatpush1.msra.mxu0 0.0
        %1114 = vmatprep.subr.mxu0 0.0
        %1115 = vmatpush1.msra.mxu0 0.0
        %1116 = vmatprep.subr.mxu0 0.0
        %1117 = vmatpush1.msra.mxu0 0.0
        %1118 = vmatprep.subr.mxu0 0.0
        %1119 = vmatpush1.msra.mxu0 0.0
        %1120 = vmatprep.mubr.f32.mxu0 0.0
        %1121 = vmatmul.mubr.f32.gmra.mrb[0].mxu0 %v1054
        %v1122 = vpop.f32.mrb[0].mxu0
        %v1123 = vadd.f32 0.0, %v1122
        %v1124 = vpop.f32.mrb[0].mxu0
        %1125 = vdwg.mxu0
        %v1126 = vadd.f32 %v1047, %v1123
        %v1127 = vld [vmem:[%s6] sm:$0xff]
        %1129 = vset.pattern.permute.xlu0 0
        %1130 = vperm.xlu0 %1129, %v1127
        %v1131 = vpop.permute.xlu0 %1130
        %v1133 = vadd.f32 %v1126, %v1131
        %v1134 = vmax.f32 %v1133, 0.0
        %v1135 = vmin.f32 %v1134, 6.0
        %v1136 = vld [vmem:[%s7] sm:$0xff]
        %s1137 = scalar_lea.vmem %s7, 8
        %v1138 = vld [vmem:[%s1137] sm:$0xff]
        %1140 = vrot.lane.b32.xlu0 %v736, 127
        %v1141 = vpop.permute.xlu0 %1140
        %v1144 = vsel %vm639, %v1138, 0
        %1146 = vmatprep.subr.mxu0 0.0
        %1147 = vmatpush1.msra.mxu0 %v1141
        %1148 = vmatprep.subr.mxu0 0.0
        %1149 = vmatpush1.msra.mxu0 0.0
        %1150 = vmatprep.subr.mxu0 0.0
        %1151 = vmatpush1.msra.mxu0 0.0
        %1152 = vmatprep.subr.mxu0 0.0
        %1153 = vmatpush1.msra.mxu0 0.0
        %1154 = vmatprep.subr.mxu0 0.0
        %1155 = vmatpush1.msra.mxu0 0.0
        %1156 = vmatprep.subr.mxu0 0.0
        %1157 = vmatpush1.msra.mxu0 0.0
        %1158 = vmatprep.subr.mxu0 0.0
        %1159 = vmatpush1.msra.mxu0 0.0
        %1160 = vmatprep.subr.mxu0 0.0
        %1161 = vmatpush1.msra.mxu0 0.0
        %1162 = vmatprep.subr.mxu0 0.0
        %1163 = vmatpush1.msra.mxu0 0.0
        %1164 = vmatprep.subr.mxu0 0.0
        %1165 = vmatpush1.msra.mxu0 0.0
        %1166 = vmatprep.subr.mxu0 0.0
        %1167 = vmatpush1.msra.mxu0 0.0
        %1168 = vmatprep.subr.mxu0 0.0
        %1169 = vmatpush1.msra.mxu0 0.0
        %1170 = vmatprep.subr.mxu0 0.0
        %1171 = vmatpush1.msra.mxu0 0.0
        %1172 = vmatprep.subr.mxu0 0.0
        %1173 = vmatpush1.msra.mxu0 0.0
        %1174 = vmatprep.subr.mxu0 0.0
        %1175 = vmatpush1.msra.mxu0 0.0
        %1176 = vmatprep.subr.mxu0 0.0
        %1177 = vmatpush1.msra.mxu0 0.0
        %1178 = vmatprep.subr.mxu0 0.0
        %1179 = vmatpush1.msra.mxu0 0.0
        %1180 = vmatprep.subr.mxu0 0.0
        %1181 = vmatpush1.msra.mxu0 0.0
        %1182 = vmatprep.subr.mxu0 0.0
        %1183 = vmatpush1.msra.mxu0 0.0
        %1184 = vmatprep.subr.mxu0 0.0
        %1185 = vmatpush1.msra.mxu0 0.0
        %1186 = vmatprep.subr.mxu0 0.0
        %1187 = vmatpush1.msra.mxu0 0.0
        %1188 = vmatprep.subr.mxu0 0.0
        %1189 = vmatpush1.msra.mxu0 0.0
        %1190 = vmatprep.subr.mxu0 0.0
        %1191 = vmatpush1.msra.mxu0 0.0
        %1192 = vmatprep.subr.mxu0 0.0
        %1193 = vmatpush1.msra.mxu0 0.0
        %1194 = vmatprep.subr.mxu0 0.0
        %1195 = vmatpush1.msra.mxu0 0.0
        %1196 = vmatprep.subr.mxu0 0.0
        %1197 = vmatpush1.msra.mxu0 0.0
        %1198 = vmatprep.subr.mxu0 0.0
        %1199 = vmatpush1.msra.mxu0 0.0
        %1200 = vmatprep.subr.mxu0 0.0
        %1201 = vmatpush1.msra.mxu0 0.0
        %1202 = vmatprep.subr.mxu0 0.0
        %1203 = vmatpush1.msra.mxu0 0.0
        %1204 = vmatprep.subr.mxu0 0.0
        %1205 = vmatpush1.msra.mxu0 0.0
        %1206 = vmatprep.subr.mxu0 0.0
        %1207 = vmatpush1.msra.mxu0 0.0
        %1208 = vmatprep.subr.mxu0 0.0
        %1209 = vmatpush1.msra.mxu0 0.0
        %1210 = vmatprep.mubr.f32.mxu0 0.0
        %1211 = vmatmul.mubr.f32.gmra.mrb[0].mxu0 %v1144
        %v1212 = vpop.f32.mrb[0].mxu0
        %v1213 = vadd.f32 0.0, %v1212
        %v1214 = vpop.f32.mrb[0].mxu0
        %1215 = vdwg.mxu0
        %v1217 = vsel %vm639, %v1136, 0
        %1219 = vmatprep.subr.mxu0 0.0
        %1220 = vmatpush1.msra.mxu0 %v736
        %1221 = vmatprep.subr.mxu0 0.0
        %1222 = vmatpush1.msra.mxu0 0.0
        %1223 = vmatprep.subr.mxu0 0.0
        %1224 = vmatpush1.msra.mxu0 0.0
        %1225 = vmatprep.subr.mxu0 0.0
        %1226 = vmatpush1.msra.mxu0 0.0
        %1227 = vmatprep.subr.mxu0 0.0
        %1228 = vmatpush1.msra.mxu0 0.0
        %1229 = vmatprep.subr.mxu0 0.0
        %1230 = vmatpush1.msra.mxu0 0.0
        %1231 = vmatprep.subr.mxu0 0.0
        %1232 = vmatpush1.msra.mxu0 0.0
        %1233 = vmatprep.subr.mxu0 0.0
        %1234 = vmatpush1.msra.mxu0 0.0
        %1235 = vmatprep.subr.mxu0 0.0
        %1236 = vmatpush1.msra.mxu0 0.0
        %1237 = vmatprep.subr.mxu0 0.0
        %1238 = vmatpush1.msra.mxu0 0.0
        %1239 = vmatprep.subr.mxu0 0.0
        %1240 = vmatpush1.msra.mxu0 0.0
        %1241 = vmatprep.subr.mxu0 0.0
        %1242 = vmatpush1.msra.mxu0 0.0
        %1243 = vmatprep.subr.mxu0 0.0
        %1244 = vmatpush1.msra.mxu0 0.0
        %1245 = vmatprep.subr.mxu0 0.0
        %1246 = vmatpush1.msra.mxu0 0.0
        %1247 = vmatprep.subr.mxu0 0.0
        %1248 = vmatpush1.msra.mxu0 0.0
        %1249 = vmatprep.subr.mxu0 0.0
        %1250 = vmatpush1.msra.mxu0 0.0
        %1251 = vmatprep.subr.mxu0 0.0
        %1252 = vmatpush1.msra.mxu0 0.0
        %1253 = vmatprep.subr.mxu0 0.0
        %1254 = vmatpush1.msra.mxu0 0.0
        %1255 = vmatprep.subr.mxu0 0.0
        %1256 = vmatpush1.msra.mxu0 0.0
        %1257 = vmatprep.subr.mxu0 0.0
        %1258 = vmatpush1.msra.mxu0 0.0
        %1259 = vmatprep.subr.mxu0 0.0
        %1260 = vmatpush1.msra.mxu0 0.0
        %1261 = vmatprep.subr.mxu0 0.0
        %1262 = vmatpush1.msra.mxu0 0.0
        %1263 = vmatprep.subr.mxu0 0.0
        %1264 = vmatpush1.msra.mxu0 0.0
        %1265 = vmatprep.subr.mxu0 0.0
        %1266 = vmatpush1.msra.mxu0 0.0
        %1267 = vmatprep.subr.mxu0 0.0
        %1268 = vmatpush1.msra.mxu0 0.0
        %1269 = vmatprep.subr.mxu0 0.0
        %1270 = vmatpush1.msra.mxu0 0.0
        %1271 = vmatprep.subr.mxu0 0.0
        %1272 = vmatpush1.msra.mxu0 0.0
        %1273 = vmatprep.subr.mxu0 0.0
        %1274 = vmatpush1.msra.mxu0 0.0
        %1275 = vmatprep.subr.mxu0 0.0
        %1276 = vmatpush1.msra.mxu0 0.0
        %1277 = vmatprep.subr.mxu0 0.0
        %1278 = vmatpush1.msra.mxu0 0.0
        %1279 = vmatprep.subr.mxu0 0.0
        %1280 = vmatpush1.msra.mxu0 0.0
        %1281 = vmatprep.subr.mxu0 0.0
        %1282 = vmatpush1.msra.mxu0 0.0
        %1283 = vmatprep.mubr.f32.mxu0 0.0
        %1284 = vmatmul.mubr.f32.gmra.mrb[0].mxu0 %v1217
        %v1285 = vpop.f32.mrb[0].mxu0
        %v1286 = vadd.f32 %v1213, %v1285
        %v1287 = vpop.f32.mrb[0].mxu0
        %1288 = vdwg.mxu0
        %s1289 = scalar_lea.vmem %s7, 16
        %v1290 = vld [vmem:[%s1289] sm:$0xff]
        %1291 = vrot.lane.b32.xlu0 %v736, 126
        %v1292 = vpop.permute.xlu0 %1291
        %v1295 = vsel %vm639, %v1290, 0
        %1297 = vmatprep.subr.mxu0 0.0
        %1298 = vmatpush1.msra.mxu0 %v1292
        %1299 = vmatprep.subr.mxu0 0.0
        %1300 = vmatpush1.msra.mxu0 0.0
        %1301 = vmatprep.subr.mxu0 0.0
        %1302 = vmatpush1.msra.mxu0 0.0
        %1303 = vmatprep.subr.mxu0 0.0
        %1304 = vmatpush1.msra.mxu0 0.0
        %1305 = vmatprep.subr.mxu0 0.0
        %1306 = vmatpush1.msra.mxu0 0.0
        %1307 = vmatprep.subr.mxu0 0.0
        %1308 = vmatpush1.msra.mxu0 0.0
        %1309 = vmatprep.subr.mxu0 0.0
        %1310 = vmatpush1.msra.mxu0 0.0
        %1311 = vmatprep.subr.mxu0 0.0
        %1312 = vmatpush1.msra.mxu0 0.0
        %1313 = vmatprep.subr.mxu0 0.0
        %1314 = vmatpush1.msra.mxu0 0.0
        %1315 = vmatprep.subr.mxu0 0.0
        %1316 = vmatpush1.msra.mxu0 0.0
        %1317 = vmatprep.subr.mxu0 0.0
        %1318 = vmatpush1.msra.mxu0 0.0
        %1319 = vmatprep.subr.mxu0 0.0
        %1320 = vmatpush1.msra.mxu0 0.0
        %1321 = vmatprep.subr.mxu0 0.0
        %1322 = vmatpush1.msra.mxu0 0.0
        %1323 = vmatprep.subr.mxu0 0.0
        %1324 = vmatpush1.msra.mxu0 0.0
        %1325 = vmatprep.subr.mxu0 0.0
        %1326 = vmatpush1.msra.mxu0 0.0
        %1327 = vmatprep.subr.mxu0 0.0
        %1328 = vmatpush1.msra.mxu0 0.0
        %1329 = vmatprep.subr.mxu0 0.0
        %1330 = vmatpush1.msra.mxu0 0.0
        %1331 = vmatprep.subr.mxu0 0.0
        %1332 = vmatpush1.msra.mxu0 0.0
        %1333 = vmatprep.subr.mxu0 0.0
        %1334 = vmatpush1.msra.mxu0 0.0
        %1335 = vmatprep.subr.mxu0 0.0
        %1336 = vmatpush1.msra.mxu0 0.0
        %1337 = vmatprep.subr.mxu0 0.0
        %1338 = vmatpush1.msra.mxu0 0.0
        %1339 = vmatprep.subr.mxu0 0.0
        %1340 = vmatpush1.msra.mxu0 0.0
        %1341 = vmatprep.subr.mxu0 0.0
        %1342 = vmatpush1.msra.mxu0 0.0
        %1343 = vmatprep.subr.mxu0 0.0
        %1344 = vmatpush1.msra.mxu0 0.0
        %1345 = vmatprep.subr.mxu0 0.0
        %1346 = vmatpush1.msra.mxu0 0.0
        %1347 = vmatprep.subr.mxu0 0.0
        %1348 = vmatpush1.msra.mxu0 0.0
        %1349 = vmatprep.subr.mxu0 0.0
        %1350 = vmatpush1.msra.mxu0 0.0
        %1351 = vmatprep.subr.mxu0 0.0
        %1352 = vmatpush1.msra.mxu0 0.0
        %1353 = vmatprep.subr.mxu0 0.0
        %1354 = vmatpush1.msra.mxu0 0.0
        %1355 = vmatprep.subr.mxu0 0.0
        %1356 = vmatpush1.msra.mxu0 0.0
        %1357 = vmatprep.subr.mxu0 0.0
        %1358 = vmatpush1.msra.mxu0 0.0
        %1359 = vmatprep.subr.mxu0 0.0
        %1360 = vmatpush1.msra.mxu0 0.0
        %1361 = vmatprep.mubr.f32.mxu0 0.0
        %1362 = vmatmul.mubr.f32.gmra.mrb[0].mxu0 %v1295
        %v1363 = vpop.f32.mrb[0].mxu0
        %v1364 = vadd.f32 0.0, %v1363
        %v1365 = vpop.f32.mrb[0].mxu0
        %1366 = vdwg.mxu0
        %v1367 = vadd.f32 %v1286, %v1364
        %v1368 = vld [vmem:[%s8] sm:$0xff]
        %1370 = vset.pattern.permute.xlu0 0
        %1371 = vperm.xlu0 %1370, %v1368
        %v1372 = vpop.permute.xlu0 %1371
        %v1374 = vadd.f32 %v1367, %v1372
        %v1375 = vmax.f32 %v1374, 0.0
        %v1376 = vmin.f32 %v1375, 6.0
        %v1377 = vsub.s32 %v611, 1
        %vm1378 = vcmp.ge.s32.totalorder %v1377, 0
        %vm1379 = vcmp.lt.s32.totalorder %v1377, 16
        %vm1380 = vmand %vm1378, %vm1379
        %v1381 = vsel %vm1380, 1, 0
        %v1382 = vcvt.s32.f32 %v1381
        %v1383 = vmul.f32 %v1376, %v1382
        %v1384 = vld [vmem:[%s9] sm:$0xff]
        %s1385 = scalar_lea.vmem %s9, 8
        %v1386 = vld [vmem:[%s1385] sm:$0xff]
        %1388 = vrot.lane.b32.xlu0 %v1383, 127
        %v1389 = vpop.permute.xlu0 %1388
        %v1392 = vsel %vm639, %v1386, 0
        %1394 = vmatprep.subr.mxu0 0.0
        %1395 = vmatpush1.msra.mxu0 %v1389
        %1396 = vmatprep.subr.mxu0 0.0
        %1397 = vmatpush1.msra.mxu0 0.0
        %1398 = vmatprep.subr.mxu0 0.0
        %1399 = vmatpush1.msra.mxu0 0.0
        %1400 = vmatprep.subr.mxu0 0.0
        %1401 = vmatpush1.msra.mxu0 0.0
        %1402 = vmatprep.subr.mxu0 0.0
        %1403 = vmatpush1.msra.mxu0 0.0
        %1404 = vmatprep.subr.mxu0 0.0
        %1405 = vmatpush1.msra.mxu0 0.0
        %1406 = vmatprep.subr.mxu0 0.0
        %1407 = vmatpush1.msra.mxu0 0.0
        %1408 = vmatprep.subr.mxu0 0.0
        %1409 = vmatpush1.msra.mxu0 0.0
        %1410 = vmatprep.subr.mxu0 0.0
        %1411 = vmatpush1.msra.mxu0 0.0
        %1412 = vmatprep.subr.mxu0 0.0
        %1413 = vmatpush1.msra.mxu0 0.0
        %1414 = vmatprep.subr.mxu0 0.0
        %1415 = vmatpush1.msra.mxu0 0.0
        %1416 = vmatprep.subr.mxu0 0.0
        %1417 = vmatpush1.msra.mxu0 0.0
        %1418 = vmatprep.subr.mxu0 0.0
        %1419 = vmatpush1.msra.mxu0 0.0
        %1420 = vmatprep.subr.mxu0 0.0
        %1421 = vmatpush1.msra.mxu0 0.0
        %1422 = vmatprep.subr.mxu0 0.0
        %1423 = vmatpush1.msra.mxu0 0.0
        %1424 = vmatprep.subr.mxu0 0.0
        %1425 = vmatpush1.msra.mxu0 0.0
        %1426 = vmatprep.subr.mxu0 0.0
        %1427 = vmatpush1.msra.mxu0 0.0
        %1428 = vmatprep.subr.mxu0 0.0
        %1429 = vmatpush1.msra.mxu0 0.0
        %1430 = vmatprep.subr.mxu0 0.0
        %1431 = vmatpush1.msra.mxu0 0.0
        %1432 = vmatprep.subr.mxu0 0.0
        %1433 = vmatpush1.msra.mxu0 0.0
        %1434 = vmatprep.subr.mxu0 0.0
        %1435 = vmatpush1.msra.mxu0 0.0
        %1436 = vmatprep.subr.mxu0 0.0
        %1437 = vmatpush1.msra.mxu0 0.0
        %1438 = vmatprep.subr.mxu0 0.0
        %1439 = vmatpush1.msra.mxu0 0.0
        %1440 = vmatprep.subr.mxu0 0.0
        %1441 = vmatpush1.msra.mxu0 0.0
        %1442 = vmatprep.subr.mxu0 0.0
        %1443 = vmatpush1.msra.mxu0 0.0
        %1444 = vmatprep.subr.mxu0 0.0
        %1445 = vmatpush1.msra.mxu0 0.0
        %1446 = vmatprep.subr.mxu0 0.0
        %1447 = vmatpush1.msra.mxu0 0.0
        %1448 = vmatprep.subr.mxu0 0.0
        %1449 = vmatpush1.msra.mxu0 0.0
        %1450 = vmatprep.subr.mxu0 0.0
        %1451 = vmatpush1.msra.mxu0 0.0
        %1452 = vmatprep.subr.mxu0 0.0
        %1453 = vmatpush1.msra.mxu0 0.0
        %1454 = vmatprep.subr.mxu0 0.0
        %1455 = vmatpush1.msra.mxu0 0.0
        %1456 = vmatprep.subr.mxu0 0.0
        %1457 = vmatpush1.msra.mxu0 0.0
        %1458 = vmatprep.mubr.f32.mxu0 0.0
        %1459 = vmatmul.mubr.f32.gmra.mrb[0].mxu0 %v1392
        %v1460 = vpop.f32.mrb[0].mxu0
        %v1461 = vadd.f32 0.0, %v1460
        %v1462 = vpop.f32.mrb[0].mxu0
        %1463 = vdwg.mxu0
        %v1465 = vsel %vm639, %v1384, 0
        %1467 = vmatprep.subr.mxu0 0.0
        %1468 = vmatpush1.msra.mxu0 %v1383
        %1469 = vmatprep.subr.mxu0 0.0
        %1470 = vmatpush1.msra.mxu0 0.0
        %1471 = vmatprep.subr.mxu0 0.0
        %1472 = vmatpush1.msra.mxu0 0.0
        %1473 = vmatprep.subr.mxu0 0.0
        %1474 = vmatpush1.msra.mxu0 0.0
        %1475 = vmatprep.subr.mxu0 0.0
        %1476 = vmatpush1.msra.mxu0 0.0
        %1477 = vmatprep.subr.mxu0 0.0
        %1478 = vmatpush1.msra.mxu0 0.0
        %1479 = vmatprep.subr.mxu0 0.0
        %1480 = vmatpush1.msra.mxu0 0.0
        %1481 = vmatprep.subr.mxu0 0.0
        %1482 = vmatpush1.msra.mxu0 0.0
        %1483 = vmatprep.subr.mxu0 0.0
        %1484 = vmatpush1.msra.mxu0 0.0
        %1485 = vmatprep.subr.mxu0 0.0
        %1486 = vmatpush1.msra.mxu0 0.0
        %1487 = vmatprep.subr.mxu0 0.0
        %1488 = vmatpush1.msra.mxu0 0.0
        %1489 = vmatprep.subr.mxu0 0.0
        %1490 = vmatpush1.msra.mxu0 0.0
        %1491 = vmatprep.subr.mxu0 0.0
        %1492 = vmatpush1.msra.mxu0 0.0
        %1493 = vmatprep.subr.mxu0 0.0
        %1494 = vmatpush1.msra.mxu0 0.0
        %1495 = vmatprep.subr.mxu0 0.0
        %1496 = vmatpush1.msra.mxu0 0.0
        %1497 = vmatprep.subr.mxu0 0.0
        %1498 = vmatpush1.msra.mxu0 0.0
        %1499 = vmatprep.subr.mxu0 0.0
        %1500 = vmatpush1.msra.mxu0 0.0
        %1501 = vmatprep.subr.mxu0 0.0
        %1502 = vmatpush1.msra.mxu0 0.0
        %1503 = vmatprep.subr.mxu0 0.0
        %1504 = vmatpush1.msra.mxu0 0.0
        %1505 = vmatprep.subr.mxu0 0.0
        %1506 = vmatpush1.msra.mxu0 0.0
        %1507 = vmatprep.subr.mxu0 0.0
        %1508 = vmatpush1.msra.mxu0 0.0
        %1509 = vmatprep.subr.mxu0 0.0
        %1510 = vmatpush1.msra.mxu0 0.0
        %1511 = vmatprep.subr.mxu0 0.0
        %1512 = vmatpush1.msra.mxu0 0.0
        %1513 = vmatprep.subr.mxu0 0.0
        %1514 = vmatpush1.msra.mxu0 0.0
        %1515 = vmatprep.subr.mxu0 0.0
        %1516 = vmatpush1.msra.mxu0 0.0
        %1517 = vmatprep.subr.mxu0 0.0
        %1518 = vmatpush1.msra.mxu0 0.0
        %1519 = vmatprep.subr.mxu0 0.0
        %1520 = vmatpush1.msra.mxu0 0.0
        %1521 = vmatprep.subr.mxu0 0.0
        %1522 = vmatpush1.msra.mxu0 0.0
        %1523 = vmatprep.subr.mxu0 0.0
        %1524 = vmatpush1.msra.mxu0 0.0
        %1525 = vmatprep.subr.mxu0 0.0
        %1526 = vmatpush1.msra.mxu0 0.0
        %1527 = vmatprep.subr.mxu0 0.0
        %1528 = vmatpush1.msra.mxu0 0.0
        %1529 = vmatprep.subr.mxu0 0.0
        %1530 = vmatpush1.msra.mxu0 0.0
        %1531 = vmatprep.mubr.f32.mxu0 0.0
        %1532 = vmatmul.mubr.f32.gmra.mrb[0].mxu0 %v1465
        %v1533 = vpop.f32.mrb[0].mxu0
        %v1534 = vadd.f32 %v1461, %v1533
        %v1535 = vpop.f32.mrb[0].mxu0
        %1536 = vdwg.mxu0
        %s1537 = scalar_lea.vmem %s9, 16
        %v1538 = vld [vmem:[%s1537] sm:$0xff]
        %1539 = vrot.lane.b32.xlu0 %v1383, 126
        %v1540 = vpop.permute.xlu0 %1539
        %v1543 = vsel %vm639, %v1538, 0
        %1545 = vmatprep.subr.mxu0 0.0
        %1546 = vmatpush1.msra.mxu0 %v1540
        %1547 = vmatprep.subr.mxu0 0.0
        %1548 = vmatpush1.msra.mxu0 0.0
        %1549 = vmatprep.subr.mxu0 0.0
        %1550 = vmatpush1.msra.mxu0 0.0
        %1551 = vmatprep.subr.mxu0 0.0
        %1552 = vmatpush1.msra.mxu0 0.0
        %1553 = vmatprep.subr.mxu0 0.0
        %1554 = vmatpush1.msra.mxu0 0.0
        %1555 = vmatprep.subr.mxu0 0.0
        %1556 = vmatpush1.msra.mxu0 0.0
        %1557 = vmatprep.subr.mxu0 0.0
        %1558 = vmatpush1.msra.mxu0 0.0
        %1559 = vmatprep.subr.mxu0 0.0
        %1560 = vmatpush1.msra.mxu0 0.0
        %1561 = vmatprep.subr.mxu0 0.0
        %1562 = vmatpush1.msra.mxu0 0.0
        %1563 = vmatprep.subr.mxu0 0.0
        %1564 = vmatpush1.msra.mxu0 0.0
        %1565 = vmatprep.subr.mxu0 0.0
        %1566 = vmatpush1.msra.mxu0 0.0
        %1567 = vmatprep.subr.mxu0 0.0
        %1568 = vmatpush1.msra.mxu0 0.0
        %1569 = vmatprep.subr.mxu0 0.0
        %1570 = vmatpush1.msra.mxu0 0.0
        %1571 = vmatprep.subr.mxu0 0.0
        %1572 = vmatpush1.msra.mxu0 0.0
        %1573 = vmatprep.subr.mxu0 0.0
        %1574 = vmatpush1.msra.mxu0 0.0
        %1575 = vmatprep.subr.mxu0 0.0
        %1576 = vmatpush1.msra.mxu0 0.0
        %1577 = vmatprep.subr.mxu0 0.0
        %1578 = vmatpush1.msra.mxu0 0.0
        %1579 = vmatprep.subr.mxu0 0.0
        %1580 = vmatpush1.msra.mxu0 0.0
        %1581 = vmatprep.subr.mxu0 0.0
        %1582 = vmatpush1.msra.mxu0 0.0
        %1583 = vmatprep.subr.mxu0 0.0
        %1584 = vmatpush1.msra.mxu0 0.0
        %1585 = vmatprep.subr.mxu0 0.0
        %1586 = vmatpush1.msra.mxu0 0.0
        %1587 = vmatprep.subr.mxu0 0.0
        %1588 = vmatpush1.msra.mxu0 0.0
        %1589 = vmatprep.subr.mxu0 0.0
        %1590 = vmatpush1.msra.mxu0 0.0
        %1591 = vmatprep.subr.mxu0 0.0
        %1592 = vmatpush1.msra.mxu0 0.0
        %1593 = vmatprep.subr.mxu0 0.0
        %1594 = vmatpush1.msra.mxu0 0.0
        %1595 = vmatprep.subr.mxu0 0.0
        %1596 = vmatpush1.msra.mxu0 0.0
        %1597 = vmatprep.subr.mxu0 0.0
        %1598 = vmatpush1.msra.mxu0 0.0
        %1599 = vmatprep.subr.mxu0 0.0
        %1600 = vmatpush1.msra.mxu0 0.0
        %1601 = vmatprep.subr.mxu0 0.0
        %1602 = vmatpush1.msra.mxu0 0.0
        %1603 = vmatprep.subr.mxu0 0.0
        %1604 = vmatpush1.msra.mxu0 0.0
        %1605 = vmatprep.subr.mxu0 0.0
        %1606 = vmatpush1.msra.mxu0 0.0
        %1607 = vmatprep.subr.mxu0 0.0
        %1608 = vmatpush1.msra.mxu0 0.0
        %1609 = vmatprep.mubr.f32.mxu0 0.0
        %1610 = vmatmul.mubr.f32.gmra.mrb[0].mxu0 %v1543
        %v1611 = vpop.f32.mrb[0].mxu0
        %v1612 = vadd.f32 0.0, %v1611
        %v1613 = vpop.f32.mrb[0].mxu0
        %1614 = vdwg.mxu0
        %v1615 = vadd.f32 %v1534, %v1612
        %v1616 = vld [vmem:[%s10] sm:$0xff]
        %1618 = vset.pattern.permute.xlu0 0
        %1619 = vperm.xlu0 %1618, %v1616
        %v1620 = vpop.permute.xlu0 %1619
        %v1622 = vadd.f32 %v1615, %v1620
        %v1623 = vmax.f32 %v1622, 0.0
        %v1624 = vmin.f32 %v1623, 6.0
        %vm1625 = vcmp.eq.s32.totalorder %v616, 1
        %v1626 = vsel %vm1625, %v606, -3e+38
        %1628 = vrot.lane.b32.xlu0 %v1626, 127
        %v1629 = vpop.permute.xlu0 %1628
        %v1631 = vmax.f32 %v1626, %v1629
        %1632 = vrot.lane.b32.xlu0 %v1626, 126
        %v1633 = vpop.permute.xlu0 %1632
        %v1635 = vmax.f32 %v1631, %v1633
        %vm1636 = vcmp.lt.s32.totalorder %v611, 16
        %v1637 = vsel %vm1636, 1, 0
        %vm1638 = vcmp.eq.s32.totalorder %v1637, 1
        %1640 = vrot.lane.b32.xlu0 %v1635, 127
        %v1641 = vpop.permute.xlu0 %1640
        %v1643 = vsel %vm1638, %v1641, 0.0
        %v1644 = vld [vmem:[%s11] sm:$0xff]
        %v1645 = vld [vmem:[%s12] sm:$0xff]
        %1647 = vset.pattern.permute.xlu0 0
        %1648 = vperm.xlu0 %1647, %v1645
        %v1649 = vpop.permute.xlu0 %1648
        %v1652 = vsel %vm639, %v1644, 0
        %1654 = vmatprep.subr.mxu0 0.0
        %1655 = vmatpush1.msra.mxu0 %v1643
        %1656 = vmatprep.subr.mxu0 0.0
        %1657 = vmatpush1.msra.mxu0 0.0
        %1658 = vmatprep.subr.mxu0 0.0
        %1659 = vmatpush1.msra.mxu0 0.0
        %1660 = vmatprep.subr.mxu0 0.0
        %1661 = vmatpush1.msra.mxu0 0.0
        %1662 = vmatprep.subr.mxu0 0.0
        %1663 = vmatpush1.msra.mxu0 0.0
        %1664 = vmatprep.subr.mxu0 0.0
        %1665 = vmatpush1.msra.mxu0 0.0
        %1666 = vmatprep.subr.mxu0 0.0
        %1667 = vmatpush1.msra.mxu0 0.0
        %1668 = vmatprep.subr.mxu0 0.0
        %1669 = vmatpush1.msra.mxu0 0.0
        %1670 = vmatprep.subr.mxu0 0.0
        %1671 = vmatpush1.msra.mxu0 0.0
        %1672 = vmatprep.subr.mxu0 0.0
        %1673 = vmatpush1.msra.mxu0 0.0
        %1674 = vmatprep.subr.mxu0 0.0
        %1675 = vmatpush1.msra.mxu0 0.0
        %1676 = vmatprep.subr.mxu0 0.0
        %1677 = vmatpush1.msra.mxu0 0.0
        %1678 = vmatprep.subr.mxu0 0.0
        %1679 = vmatpush1.msra.mxu0 0.0
        %1680 = vmatprep.subr.mxu0 0.0
        %1681 = vmatpush1.msra.mxu0 0.0
        %1682 = vmatprep.subr.mxu0 0.0
        %1683 = vmatpush1.msra.mxu0 0.0
        %1684 = vmatprep.subr.mxu0 0.0
        %1685 = vmatpush1.msra.mxu0 0.0
        %1686 = vmatprep.subr.mxu0 0.0
        %1687 = vmatpush1.msra.mxu0 0.0
        %1688 = vmatprep.subr.mxu0 0.0
        %1689 = vmatpush1.msra.mxu0 0.0
        %1690 = vmatprep.subr.mxu0 0.0
        %1691 = vmatpush1.msra.mxu0 0.0
        %1692 = vmatprep.subr.mxu0 0.0
        %1693 = vmatpush1.msra.mxu0 0.0
        %1694 = vmatprep.subr.mxu0 0.0
        %1695 = vmatpush1.msra.mxu0 0.0
        %1696 = vmatprep.subr.mxu0 0.0
        %1697 = vmatpush1.msra.mxu0 0.0
        %1698 = vmatprep.subr.mxu0 0.0
        %1699 = vmatpush1.msra.mxu0 0.0
        %1700 = vmatprep.subr.mxu0 0.0
        %1701 = vmatpush1.msra.mxu0 0.0
        %1702 = vmatprep.subr.mxu0 0.0
        %1703 = vmatpush1.msra.mxu0 0.0
        %1704 = vmatprep.subr.mxu0 0.0
        %1705 = vmatpush1.msra.mxu0 0.0
        %1706 = vmatprep.subr.mxu0 0.0
        %1707 = vmatpush1.msra.mxu0 0.0
        %1708 = vmatprep.subr.mxu0 0.0
        %1709 = vmatpush1.msra.mxu0 0.0
        %1710 = vmatprep.subr.mxu0 0.0
        %1711 = vmatpush1.msra.mxu0 0.0
        %1712 = vmatprep.subr.mxu0 0.0
        %1713 = vmatpush1.msra.mxu0 0.0
        %1714 = vmatprep.subr.mxu0 0.0
        %1715 = vmatpush1.msra.mxu0 0.0
        %1716 = vmatprep.subr.mxu0 0.0
        %1717 = vmatpush1.msra.mxu0 0.0
        %1718 = vmatprep.mubr.f32.mxu0 0.0
        %1719 = vmatmul.mubr.f32.gmra.mrb[0].mxu0 %v1652
        %v1720 = vpop.f32.mrb[0].mxu0
        %v1721 = vadd.f32 %v1649, %v1720
        %v1722 = vpop.f32.mrb[0].mxu0
        %1723 = vdwg.mxu0
        %v1724 = vmax.f32 %v1721, 0.0
        %v1725 = vmin.f32 %v1724, 6.0
        %1727 = vrot.lane.b32.xlu0 %v1135, 2
        %v1728 = vpop.permute.xlu0 %1727
        %1730 = vrot.lane.b32.xlu0 %v1624, 2
        %v1731 = vpop.permute.xlu0 %1730
        %1733 = vrot.lane.b32.xlu0 %v1725, 2
        %v1734 = vpop.permute.xlu0 %1733
        %1736 = vrot.lane.b32.xlu0 %v732, 126
        %v1737 = vpop.permute.xlu0 %1736
        %1738 = vrot.lane.b32.xlu0 %v1728, 126
        %v1739 = vpop.permute.xlu0 %1738
        %1740 = vrot.lane.b32.xlu0 %v1731, 126
        %v1741 = vpop.permute.xlu0 %1740
        %1742 = vrot.lane.b32.xlu0 %v1734, 126
        %v1743 = vpop.permute.xlu0 %1742
        %vm1748 = vcmask 130048
        %1749 = vst.msk [vmem:[%s581] sm:$0xff] %vm1748, %v1737
        %1750 = vst.msk [vmem:[%s581 + $0x8] sm:$0xff] %vm1748, %v1739
        %1751 = vst.msk [vmem:[%s581 + $0x10] sm:$0xff] %vm1748, %v1741
        %1752 = vst.msk [vmem:[%s581 + $0x18] sm:$0xff] %vm1748, %v1743
        %p1753 = scmp.lt.s32.totalorder %s34, 1
        %s1754 = scalar_select %p1753, %s34, 1
        %p1755 = scmp.lt.s32.totalorder %s35, 0
        %s1756 = scalar_select %p1755, %s35, 0
        %s1757 = smul.addr %s1754, 4
        %s1758 = sadd.s32 %s1756, %s1757
        %s1759 = smul.addr %s1758, 8
        %s1760 = scalar_lea.vmem %s13, %s1759
        // Predicated region
        $region85: #{tpu_custom_call.1} parent=71 // pred_check
          %p1761 = pneg %p368
        $region86: #{tpu_custom_call.1} parent=71 // pred_check_branch
          %1763 = sbr.rel (%p1761) target = $region88
        $region87: #{tpu_custom_call.1} parent=71 // pred_region
          _
        $region88: #{tpu_custom_call.1} parent=71 // pred_fallthru
          _
      $region72: #{tpu_custom_call.1} parent=5 // pred_fallthru
        _
      %p1764 = scmp.le.s32.totalorder 2, %s25
      // Predicated region
      $region89: #{tpu_custom_call.1} parent=5 // pred_check
        %p1765 = pneg %p1764
      $region90: #{tpu_custom_call.1} parent=5 // pred_check_branch
        %1767 = sbr.rel (%p1765) target = $region92
      $region91: #{tpu_custom_call.1} parent=5 // pred_region
        %s1768 = ssub.s32 %s25, 2
        // Predicated region
        $region93: #{tpu_custom_call.1} parent=91 // pred_check
          %p1769 = pneg %p374
        $region94: #{tpu_custom_call.1} parent=91 // pred_check_branch
          %1771 = sbr.rel (%p1769) target = $region96
        $region95: #{tpu_custom_call.1} parent=91 // pred_region
          %p1772 = scmp.lt.s32.totalorder %s36, 1
          %s1773 = scalar_select %p1772, %s36, 1
          %p1774 = scmp.lt.s32.totalorder %s37, 0
          %s1775 = scalar_select %p1774, %s37, 0
          %s1776 = smul.addr %s1773, 4
          %s1777 = sadd.s32 %s1775, %s1776
          %s1778 = smul.addr %s1777, 8
          %s1779 = scalar_lea.vmem %s13, %s1778
        $region96: #{tpu_custom_call.1} parent=91 // pred_fallthru
          _
      $region92: #{tpu_custom_call.1} parent=5 // pred_fallthru
        _
    $region6: #{tpu_custom_call.1} parent=1 // loop_footer
      %s29 = sadd.s32 1, %s25
    $region7: #{tpu_custom_call.1} parent=1 // loop_footer_branch
      %24 = sbr.rel target = $region3
    $region8: #{tpu_custom_call.1} parent=1 // loop_exit
      _
    %1780 = vsyncpa [#allocation3], 1
    %s1781 = scalar_lea.sflag [#allocation3], 1
    %1782 = vsyncpa %s1781, 1
    %1783 = vsyncpa [#allocation5], 1
    %s1784 = scalar_lea.sflag [#allocation5], 1
    %1785 = vsyncpa %s1784, 1

</llo_original>
